<compile_context>
chip_gen: v7x
topology: tpu7x:2x2x1
jax: 0.10.0
libtpu: 0.0.40
codegen_flags: <defaults>
</compile_context>

<pallas_src>
import jax
import jax.numpy as jnp
from jax.experimental import pallas as pl
from jax.experimental.pallas import tpu as pltpu

BLOCK_SIZE = 8     # T (sequence length)
HEAD_SIZE = 8      # D
N_EMBED = 32       # C
NUM_HEADS = 4      # H, H * D == C
GROUP = 16         # G sequences packed per super-block; G * T == 128 (MXU-friendly)

# Batch tile (sequences) per grid step. Multiple of GROUP. 512 amortizes per-step pipeline
# overhead on v5e/v6e; on v7x the wrapper keeps >=2 grid steps so both TensorCores get work,
# and 48 MiB scoped VMEM (set below) bounds the lane-padded intermediates.
NB_TARGET = 512

NEG_BIAS = -1e9    # finite mask bias (NOT -inf): fully-masked entries underflow to exp()=0


def mha_kernel(x_ref, wqkv_ref, wp_ref, bp_ref, mask_ref, o_ref):
    T, C, H, D, G = BLOCK_SIZE, N_EMBED, NUM_HEADS, HEAD_SIZE, GROUP
    nb = x_ref.shape[0]
    ng = nb // G
    GT = G * T                                                     # 128 tokens per super-block

    # ---- fused QKV projection: one MXU matmul (scale already folded into the Q columns) ----
    x2 = x_ref[...].reshape(nb * T, C)                             # bf16, leading-dim merge only
    qkv = jnp.dot(x2, wqkv_ref[...],
                  preferred_element_type=jnp.float32)              # (nb*T, 3C) f32 accumulate
    qkv = qkv.astype(jnp.bfloat16).reshape(ng, GT, 3 * C)          # (ng, 128, 96) bf16

    mask = mask_ref[...]                                           # (128,128) additive bias

    # ---- attention: heads = 4-way static loop, sequences packed 16-per-128-token block ----
    head_outs = []
    for h in range(H):                                             # each head's s/p die per iter
        lo = h * D
        q = qkv[:, :, lo:lo + D]                                   # (ng, 128, 8) bf16 (pre-scaled)
        k = qkv[:, :, C + lo:C + lo + D]                           # (ng, 128, 8) bf16
        v = qkv[:, :, 2 * C + lo:2 * C + lo + D]                   # (ng, 128, 8) bf16

        s = jnp.einsum('gqd,gkd->gqk', q, k,
                       preferred_element_type=jnp.float32)         # (ng,128,128) batched matmul
        s = s + mask                                               # block-diag causal bias (one add)

        m = jnp.max(s, axis=-1, keepdims=True)
        p = jnp.exp(s - m)
        l = jnp.sum(p, axis=-1, keepdims=True)
        p = (p * pl.reciprocal(l, approx=True)).astype(jnp.bfloat16)   # EUP recip, bf16 for MXU
        # attention dropout: identity in eval/inference mode.

        o_h = jnp.einsum('gqk,gkd->gqd', p, v,
                         preferred_element_type=jnp.float32)       # (ng,128,8)
        head_outs.append(o_h.astype(jnp.bfloat16))

    # ---- single K=32 output projection (cheap 8->32 lane concat, no per-head fold) ----
    cat = jnp.concatenate(head_outs, axis=-1).reshape(nb * T, C)   # (nb*T, 32) bf16
    out = jnp.dot(cat, wp_ref[...],
                  preferred_element_type=jnp.float32) + bp_ref[...]  # (nb*T, 32) f32
    # projection dropout: identity in eval/inference mode.

    # ---- lane-dense writeback: 8 direct lane-offset stores into the (nb, 256) block ----
    out = out.reshape(nb, T, C)                                    # leading-dim split only
    for t in range(T):
        o_ref[:, t * C:(t + 1) * C] = out[:, t, :].astype(o_ref.dtype)


def multi_head_attention(x, wq, wk, wv, wp, bp, *, nb_target=NB_TARGET):
    B, T, C = x.shape
    assert T == BLOCK_SIZE and C == N_EMBED
    orig_dtype = x.dtype
    G = GROUP
    scale = HEAD_SIZE ** (-0.5)

    # Fuse Q/K/V weights, fold the attention scale into the Q columns, cast to bf16.
    wqkv = jnp.concatenate([wq * scale, wk, wv], axis=1).astype(jnp.bfloat16)   # (C, 3C)
    wp_bf = wp.astype(jnp.bfloat16)                                             # (C, C)
    bp_f32 = bp.reshape(1, C).astype(jnp.float32)                               # (1, C)

    # Block-diagonal causal additive mask for G packed sequences of length T (finite bias).
    idx = jnp.arange(G * T)
    same_seq = (idx[:, None] // T) == (idx[None, :] // T)
    causal = idx[None, :] <= idx[:, None]
    mask = jnp.where(same_seq & causal, 0.0, NEG_BIAS).astype(jnp.float32)      # (128, 128)

    # Batch tile: multiple of G; aim for >=2 grid steps when B allows (v7x two-TC sharding),
    # capped at nb_target to respect VMEM with lane padding accounted for.
    def rup(a, m):
        return ((a + m - 1) // m) * m

    if B <= G:
        nb = G
    else:
        nb = min(nb_target, max(G, rup(pl.cdiv(B, 2), G)))
    b_pad = rup(B, nb)

    x_in = x.astype(jnp.bfloat16)
    if b_pad != B:
        x_in = jnp.pad(x_in, ((0, b_pad - B), (0, 0), (0, 0)))     # zero rows: harmless, sliced off

    grid = (b_pad // nb,)
    resident = pl.BlockSpec(memory_space=pltpu.MemorySpace.VMEM)    # small grid-invariant residents

    out_flat = pl.pallas_call(
        mha_kernel,
        out_shape=jax.ShapeDtypeStruct((b_pad, T * C), orig_dtype),
        grid_spec=pltpu.PrefetchScalarGridSpec(
            num_scalar_prefetch=0,
            grid=grid,
            in_specs=[
                pl.BlockSpec((nb, T, C), lambda b: (b, 0, 0)),      # x batch tile (bf16)
                resident,                                           # fused Wqkv (C, 3C) bf16
                resident,                                           # Wp (C, C) bf16
                resident,                                           # bp (1, C) f32
                resident,                                           # additive mask (128,128) f32
            ],
            out_specs=pl.BlockSpec((nb, T * C), lambda b: (b, 0)),  # lane-dense output block
        ),
        compiler_params=pltpu.CompilerParams(
            dimension_semantics=("parallel",),                      # independent batch tiles
            vmem_limit_bytes=48 * 1024 * 1024,                      # v5e default 16 MiB is too low
        ),
    )(x_in, wqkv, wp_bf, bp_f32, mask)

    return out_flat[:B].reshape(B, T, C)


def reference(x, wq, wk, wv, wp, bp):
    """Pure-JAX f32 reference mirroring the PyTorch forward (eval mode, exact softmax)."""
    B, T, C = x.shape
    q = x @ wq
    k = x @ wk
    v = x @ wv
    outs = []
    tril = jnp.tril(jnp.ones((T, T), dtype=bool))
    for h in range(NUM_HEADS):
        lo, hi = h * HEAD_SIZE, (h + 1) * HEAD_SIZE
        s = (q[:, :, lo:hi] @ jnp.swapaxes(k[:, :, lo:hi], -2, -1)) * HEAD_SIZE ** (-0.5)
        s = jnp.where(tril, s, -jnp.inf)
        p = jax.nn.softmax(s, axis=-1)
        outs.append(p @ v[:, :, lo:hi])
    cat = jnp.concatenate(outs, axis=-1)
    return cat @ wp + bp


if __name__ == "__main__":
    key = jax.random.PRNGKey(0)
    kx, kq, kk, kv, kp, kb = jax.random.split(key, 6)

    B = 2
    x = jax.random.normal(kx, (B, BLOCK_SIZE, N_EMBED), dtype=jnp.float32)

    # Deterministic parameter init (roughly nn.Linear's scale), stored as (in, out).
    bound = 1.0 / (N_EMBED ** 0.5)
    wq = jax.random.uniform(kq, (N_EMBED, NUM_HEADS * HEAD_SIZE), jnp.float32, -bound, bound)
    wk = jax.random.uniform(kk, (N_EMBED, NUM_HEADS * HEAD_SIZE), jnp.float32, -bound, bound)
    wv = jax.random.uniform(kv, (N_EMBED, NUM_HEADS * HEAD_SIZE), jnp.float32, -bound, bound)
    wp = jax.random.uniform(kp, (N_EMBED, N_EMBED), jnp.float32, -bound, bound)
    bp = jax.random.uniform(kb, (1, N_EMBED), jnp.float32, -bound, bound)

    out = multi_head_attention(x, wq, wk, wv, wp, bp)
    out = jax.block_until_ready(out)

    ref = reference(x, wq, wk, wv, wp, bp)
    assert out.shape == (B, BLOCK_SIZE, N_EMBED)
    # Tolerance accounts for bf16 matmul inputs (f32 accumulation) and the EUP approximate
    # reciprocal in the softmax normalization.
    assert jnp.allclose(out, ref, atol=5e-2, rtol=5e-2), "mismatch vs JAX reference"

    print("KERNEL_OK")
</pallas_src>

<mosaic_0001>
module attributes {stable_mosaic.version = 11 : i64} {
  func.func @mha_kernel(%arg0: i32, %arg1: memref<16x8x32xbf16, #tpu.memory_space<vmem>>, %arg2: memref<32x96xbf16, #tpu.memory_space<vmem>>, %arg3: memref<32x32xbf16, #tpu.memory_space<vmem>>, %arg4: memref<1x32xf32, #tpu.memory_space<vmem>>, %arg5: memref<128x128xf32, #tpu.memory_space<vmem>>, %arg6: memref<16x256xf32, #tpu.memory_space<vmem>>) attributes {dimension_semantics = [#tpu.dimension_semantics<parallel>], iteration_bounds = array<i64: 1>, scalar_prefetch = 0 : i64, scratch_operands = 0 : i64, tpu.core_type = #tpu.core_type<tc>, window_params = [{transform_indices = @transform_0, window_bounds = array<i64: 16, 8, 32>}, {pipeline_mode = #tpu.pipeline_mode<synchronous>, transform_indices = @transform_1, window_bounds = array<i64: 32, 96>}, {pipeline_mode = #tpu.pipeline_mode<synchronous>, transform_indices = @transform_2, window_bounds = array<i64: 32, 32>}, {pipeline_mode = #tpu.pipeline_mode<synchronous>, transform_indices = @transform_3, window_bounds = array<i64: 1, 32>}, {pipeline_mode = #tpu.pipeline_mode<synchronous>, transform_indices = @transform_4, window_bounds = array<i64: 128, 128>}, {transform_indices = @transform_5, window_bounds = array<i64: 16, 256>}]} {
    %c0 = arith.constant 0 : index
    %c0_0 = arith.constant 0 : index
    %c0_1 = arith.constant 0 : index
    %0 = vector.load %arg1[%c0, %c0_0, %c0_1] : memref<16x8x32xbf16, #tpu.memory_space<vmem>>, vector<16x8x32xbf16>
    %1 = vector.shape_cast %0 : vector<16x8x32xbf16> to vector<128x32xbf16>
    %c0_2 = arith.constant 0 : index
    %c0_3 = arith.constant 0 : index
    %2 = vector.load %arg2[%c0_2, %c0_3] : memref<32x96xbf16, #tpu.memory_space<vmem>>, vector<32x96xbf16>
    %cst = arith.constant dense<0.000000e+00> : vector<128x96xf32>
    %3 = tpu.matmul %1, %2, %cst {dimension_numbers = #tpu.dot_dimension_numbers<[1], [0], [0], [1], [0, 0, 1, 1], [], []>} : vector<128x32xbf16>, vector<32x96xbf16>, vector<128x96xf32> -> vector<128x96xf32>
    %4 = arith.truncf %3 : vector<128x96xf32> to vector<128x96xbf16>
    %5 = vector.shape_cast %4 : vector<128x96xbf16> to vector<1x128x96xbf16>
    %c0_4 = arith.constant 0 : index
    %c0_5 = arith.constant 0 : index
    %6 = vector.load %arg5[%c0_4, %c0_5] : memref<128x128xf32, #tpu.memory_space<vmem>>, vector<128x128xf32>
    %7 = vector.extract_strided_slice %5 {offsets = [0, 0, 0], sizes = [1, 128, 8], strides = [1, 1, 1]} : vector<1x128x96xbf16> to vector<1x128x8xbf16>
    %8 = vector.extract_strided_slice %5 {offsets = [0, 0, 32], sizes = [1, 128, 8], strides = [1, 1, 1]} : vector<1x128x96xbf16> to vector<1x128x8xbf16>
    %9 = vector.extract_strided_slice %5 {offsets = [0, 0, 64], sizes = [1, 128, 8], strides = [1, 1, 1]} : vector<1x128x96xbf16> to vector<1x128x8xbf16>
    "tpu.trace_start"() <{level = 10 : i32, message = "gqd,gkd->gqk"}> : () -> ()
    %cst_6 = arith.constant dense<0.000000e+00> : vector<1x128x128xf32>
    %10 = tpu.matmul %7, %8, %cst_6 {dimension_numbers = #tpu.dot_dimension_numbers<[2], [2], [1], [1], [0, 0, 0, 1, 1, 1], [0], [0]>} : vector<1x128x8xbf16>, vector<1x128x8xbf16>, vector<1x128x128xf32> -> vector<1x128x128xf32>
    "tpu.trace_stop"() : () -> ()
    %11 = vector.shape_cast %6 : vector<128x128xf32> to vector<1x128x128xf32>
    %12 = arith.addf %10, %11 : vector<1x128x128xf32>
    %cst_7 = arith.constant dense<0xFF800000> : vector<1x128xf32>
    %13 = vector.multi_reduction <maximumf>, %12, %cst_7 [2] : vector<1x128x128xf32> to vector<1x128xf32>
    %14 = vector.shape_cast %13 : vector<1x128xf32> to vector<1x128x1xf32>
    %15 = vector.broadcast %14 : vector<1x128x1xf32> to vector<1x128x128xf32>
    %16 = arith.subf %12, %15 : vector<1x128x128xf32>
    %17 = math.exp %16 : vector<1x128x128xf32>
    %cst_8 = arith.constant dense<0.000000e+00> : vector<1x128xf32>
    %18 = vector.multi_reduction <add>, %17, %cst_8 [2] : vector<1x128x128xf32> to vector<1x128xf32>
    %19 = vector.shape_cast %18 : vector<1x128xf32> to vector<1x128x1xf32>
    %20 = tpu.reciprocal %19 {approx = true} : vector<1x128x1xf32> -> vector<1x128x1xf32>
    %21 = vector.broadcast %20 : vector<1x128x1xf32> to vector<1x128x128xf32>
    %22 = arith.mulf %17, %21 : vector<1x128x128xf32>
    %23 = arith.truncf %22 : vector<1x128x128xf32> to vector<1x128x128xbf16>
    "tpu.trace_start"() <{level = 10 : i32, message = "gqk,gkd->gqd"}> : () -> ()
    %cst_9 = arith.constant dense<0.000000e+00> : vector<1x128x8xf32>
    %24 = tpu.matmul %23, %9, %cst_9 {dimension_numbers = #tpu.dot_dimension_numbers<[2], [1], [1], [2], [0, 0, 0, 1, 1, 2], [0], [0]>} : vector<1x128x128xbf16>, vector<1x128x8xbf16>, vector<1x128x8xf32> -> vector<1x128x8xf32>
    "tpu.trace_stop"() : () -> ()
    %25 = arith.truncf %24 : vector<1x128x8xf32> to vector<1x128x8xbf16>
    %26 = vector.extract_strided_slice %5 {offsets = [0, 0, 8], sizes = [1, 128, 8], strides = [1, 1, 1]} : vector<1x128x96xbf16> to vector<1x128x8xbf16>
    %27 = vector.extract_strided_slice %5 {offsets = [0, 0, 40], sizes = [1, 128, 8], strides = [1, 1, 1]} : vector<1x128x96xbf16> to vector<1x128x8xbf16>
    %28 = vector.extract_strided_slice %5 {offsets = [0, 0, 72], sizes = [1, 128, 8], strides = [1, 1, 1]} : vector<1x128x96xbf16> to vector<1x128x8xbf16>
    "tpu.trace_start"() <{level = 10 : i32, message = "gqd,gkd->gqk"}> : () -> ()
    %cst_10 = arith.constant dense<0.000000e+00> : vector<1x128x128xf32>
    %29 = tpu.matmul %26, %27, %cst_10 {dimension_numbers = #tpu.dot_dimension_numbers<[2], [2], [1], [1], [0, 0, 0, 1, 1, 1], [0], [0]>} : vector<1x128x8xbf16>, vector<1x128x8xbf16>, vector<1x128x128xf32> -> vector<1x128x128xf32>
    "tpu.trace_stop"() : () -> ()
    %30 = vector.shape_cast %6 : vector<128x128xf32> to vector<1x128x128xf32>
    %31 = arith.addf %29, %30 : vector<1x128x128xf32>
    %cst_11 = arith.constant dense<0xFF800000> : vector<1x128xf32>
    %32 = vector.multi_reduction <maximumf>, %31, %cst_11 [2] : vector<1x128x128xf32> to vector<1x128xf32>
    %33 = vector.shape_cast %32 : vector<1x128xf32> to vector<1x128x1xf32>
    %34 = vector.broadcast %33 : vector<1x128x1xf32> to vector<1x128x128xf32>
    %35 = arith.subf %31, %34 : vector<1x128x128xf32>
    %36 = math.exp %35 : vector<1x128x128xf32>
    %cst_12 = arith.constant dense<0.000000e+00> : vector<1x128xf32>
    %37 = vector.multi_reduction <add>, %36, %cst_12 [2] : vector<1x128x128xf32> to vector<1x128xf32>
    %38 = vector.shape_cast %37 : vector<1x128xf32> to vector<1x128x1xf32>
    %39 = tpu.reciprocal %38 {approx = true} : vector<1x128x1xf32> -> vector<1x128x1xf32>
    %40 = vector.broadcast %39 : vector<1x128x1xf32> to vector<1x128x128xf32>
    %41 = arith.mulf %36, %40 : vector<1x128x128xf32>
    %42 = arith.truncf %41 : vector<1x128x128xf32> to vector<1x128x128xbf16>
    "tpu.trace_start"() <{level = 10 : i32, message = "gqk,gkd->gqd"}> : () -> ()
    %cst_13 = arith.constant dense<0.000000e+00> : vector<1x128x8xf32>
    %43 = tpu.matmul %42, %28, %cst_13 {dimension_numbers = #tpu.dot_dimension_numbers<[2], [1], [1], [2], [0, 0, 0, 1, 1, 2], [0], [0]>} : vector<1x128x128xbf16>, vector<1x128x8xbf16>, vector<1x128x8xf32> -> vector<1x128x8xf32>
    "tpu.trace_stop"() : () -> ()
    %44 = arith.truncf %43 : vector<1x128x8xf32> to vector<1x128x8xbf16>
    %45 = vector.extract_strided_slice %5 {offsets = [0, 0, 16], sizes = [1, 128, 8], strides = [1, 1, 1]} : vector<1x128x96xbf16> to vector<1x128x8xbf16>
    %46 = vector.extract_strided_slice %5 {offsets = [0, 0, 48], sizes = [1, 128, 8], strides = [1, 1, 1]} : vector<1x128x96xbf16> to vector<1x128x8xbf16>
    %47 = vector.extract_strided_slice %5 {offsets = [0, 0, 80], sizes = [1, 128, 8], strides = [1, 1, 1]} : vector<1x128x96xbf16> to vector<1x128x8xbf16>
    "tpu.trace_start"() <{level = 10 : i32, message = "gqd,gkd->gqk"}> : () -> ()
    %cst_14 = arith.constant dense<0.000000e+00> : vector<1x128x128xf32>
    %48 = tpu.matmul %45, %46, %cst_14 {dimension_numbers = #tpu.dot_dimension_numbers<[2], [2], [1], [1], [0, 0, 0, 1, 1, 1], [0], [0]>} : vector<1x128x8xbf16>, vector<1x128x8xbf16>, vector<1x128x128xf32> -> vector<1x128x128xf32>
    "tpu.trace_stop"() : () -> ()
    %49 = vector.shape_cast %6 : vector<128x128xf32> to vector<1x128x128xf32>
    %50 = arith.addf %48, %49 : vector<1x128x128xf32>
    %cst_15 = arith.constant dense<0xFF800000> : vector<1x128xf32>
    %51 = vector.multi_reduction <maximumf>, %50, %cst_15 [2] : vector<1x128x128xf32> to vector<1x128xf32>
    %52 = vector.shape_cast %51 : vector<1x128xf32> to vector<1x128x1xf32>
    %53 = vector.broadcast %52 : vector<1x128x1xf32> to vector<1x128x128xf32>
    %54 = arith.subf %50, %53 : vector<1x128x128xf32>
    %55 = math.exp %54 : vector<1x128x128xf32>
    %cst_16 = arith.constant dense<0.000000e+00> : vector<1x128xf32>
    %56 = vector.multi_reduction <add>, %55, %cst_16 [2] : vector<1x128x128xf32> to vector<1x128xf32>
    %57 = vector.shape_cast %56 : vector<1x128xf32> to vector<1x128x1xf32>
    %58 = tpu.reciprocal %57 {approx = true} : vector<1x128x1xf32> -> vector<1x128x1xf32>
    %59 = vector.broadcast %58 : vector<1x128x1xf32> to vector<1x128x128xf32>
    %60 = arith.mulf %55, %59 : vector<1x128x128xf32>
    %61 = arith.truncf %60 : vector<1x128x128xf32> to vector<1x128x128xbf16>
    "tpu.trace_start"() <{level = 10 : i32, message = "gqk,gkd->gqd"}> : () -> ()
    %cst_17 = arith.constant dense<0.000000e+00> : vector<1x128x8xf32>
    %62 = tpu.matmul %61, %47, %cst_17 {dimension_numbers = #tpu.dot_dimension_numbers<[2], [1], [1], [2], [0, 0, 0, 1, 1, 2], [0], [0]>} : vector<1x128x128xbf16>, vector<1x128x8xbf16>, vector<1x128x8xf32> -> vector<1x128x8xf32>
    "tpu.trace_stop"() : () -> ()
    %63 = arith.truncf %62 : vector<1x128x8xf32> to vector<1x128x8xbf16>
    %64 = vector.extract_strided_slice %5 {offsets = [0, 0, 24], sizes = [1, 128, 8], strides = [1, 1, 1]} : vector<1x128x96xbf16> to vector<1x128x8xbf16>
    %65 = vector.extract_strided_slice %5 {offsets = [0, 0, 56], sizes = [1, 128, 8], strides = [1, 1, 1]} : vector<1x128x96xbf16> to vector<1x128x8xbf16>
    %66 = vector.extract_strided_slice %5 {offsets = [0, 0, 88], sizes = [1, 128, 8], strides = [1, 1, 1]} : vector<1x128x96xbf16> to vector<1x128x8xbf16>
    "tpu.trace_start"() <{level = 10 : i32, message = "gqd,gkd->gqk"}> : () -> ()
    %cst_18 = arith.constant dense<0.000000e+00> : vector<1x128x128xf32>
    %67 = tpu.matmul %64, %65, %cst_18 {dimension_numbers = #tpu.dot_dimension_numbers<[2], [2], [1], [1], [0, 0, 0, 1, 1, 1], [0], [0]>} : vector<1x128x8xbf16>, vector<1x128x8xbf16>, vector<1x128x128xf32> -> vector<1x128x128xf32>
    "tpu.trace_stop"() : () -> ()
    %68 = vector.shape_cast %6 : vector<128x128xf32> to vector<1x128x128xf32>
    %69 = arith.addf %67, %68 : vector<1x128x128xf32>
    %cst_19 = arith.constant dense<0xFF800000> : vector<1x128xf32>
    %70 = vector.multi_reduction <maximumf>, %69, %cst_19 [2] : vector<1x128x128xf32> to vector<1x128xf32>
    %71 = vector.shape_cast %70 : vector<1x128xf32> to vector<1x128x1xf32>
    %72 = vector.broadcast %71 : vector<1x128x1xf32> to vector<1x128x128xf32>
    %73 = arith.subf %69, %72 : vector<1x128x128xf32>
    %74 = math.exp %73 : vector<1x128x128xf32>
    %cst_20 = arith.constant dense<0.000000e+00> : vector<1x128xf32>
    %75 = vector.multi_reduction <add>, %74, %cst_20 [2] : vector<1x128x128xf32> to vector<1x128xf32>
    %76 = vector.shape_cast %75 : vector<1x128xf32> to vector<1x128x1xf32>
    %77 = tpu.reciprocal %76 {approx = true} : vector<1x128x1xf32> -> vector<1x128x1xf32>
    %78 = vector.broadcast %77 : vector<1x128x1xf32> to vector<1x128x128xf32>
    %79 = arith.mulf %74, %78 : vector<1x128x128xf32>
    %80 = arith.truncf %79 : vector<1x128x128xf32> to vector<1x128x128xbf16>
    "tpu.trace_start"() <{level = 10 : i32, message = "gqk,gkd->gqd"}> : () -> ()
    %cst_21 = arith.constant dense<0.000000e+00> : vector<1x128x8xf32>
    %81 = tpu.matmul %80, %66, %cst_21 {dimension_numbers = #tpu.dot_dimension_numbers<[2], [1], [1], [2], [0, 0, 0, 1, 1, 2], [0], [0]>} : vector<1x128x128xbf16>, vector<1x128x8xbf16>, vector<1x128x8xf32> -> vector<1x128x8xf32>
    "tpu.trace_stop"() : () -> ()
    %82 = arith.truncf %81 : vector<1x128x8xf32> to vector<1x128x8xbf16>
    %83 = tpu.concatenate %25, %44, %63, %82 in 2 : vector<1x128x8xbf16>, vector<1x128x8xbf16>, vector<1x128x8xbf16>, vector<1x128x8xbf16> -> vector<1x128x32xbf16>
    %84 = vector.shape_cast %83 : vector<1x128x32xbf16> to vector<128x32xbf16>
    %c0_22 = arith.constant 0 : index
    %c0_23 = arith.constant 0 : index
    %85 = vector.load %arg3[%c0_22, %c0_23] : memref<32x32xbf16, #tpu.memory_space<vmem>>, vector<32x32xbf16>
    %cst_24 = arith.constant dense<0.000000e+00> : vector<128x32xf32>
    %86 = tpu.matmul %84, %85, %cst_24 {dimension_numbers = #tpu.dot_dimension_numbers<[1], [0], [0], [1], [0, 0, 1, 1], [], []>} : vector<128x32xbf16>, vector<32x32xbf16>, vector<128x32xf32> -> vector<128x32xf32>
    %c0_25 = arith.constant 0 : index
    %c0_26 = arith.constant 0 : index
    %87 = vector.load %arg4[%c0_25, %c0_26] : memref<1x32xf32, #tpu.memory_space<vmem>>, vector<1x32xf32>
    %88 = vector.broadcast %87 : vector<1x32xf32> to vector<128x32xf32>
    %89 = arith.addf %86, %88 : vector<128x32xf32>
    %90 = vector.shape_cast %89 : vector<128x32xf32> to vector<16x8x32xf32>
    %91 = vector.extract_strided_slice %90 {offsets = [0, 0, 0], sizes = [16, 1, 32], strides = [1, 1, 1]} : vector<16x8x32xf32> to vector<16x1x32xf32>
    %92 = vector.shape_cast %91 : vector<16x1x32xf32> to vector<16x32xf32>
    %c0_27 = arith.constant 0 : index
    %c0_28 = arith.constant 0 : index
    %93 = vector.load %arg6[%c0_27, %c0_28] : memref<16x256xf32, #tpu.memory_space<vmem>>, vector<16x32xf32>
    tpu.vector_store %arg6[%c0_27, %c0_28], %92 {strides = array<i32>} : memref<16x256xf32, #tpu.memory_space<vmem>>, vector<16x32xf32>,
    %94 = vector.extract_strided_slice %90 {offsets = [0, 1, 0], sizes = [16, 1, 32], strides = [1, 1, 1]} : vector<16x8x32xf32> to vector<16x1x32xf32>
    %95 = vector.shape_cast %94 : vector<16x1x32xf32> to vector<16x32xf32>
    %c0_29 = arith.constant 0 : index
    %c32 = arith.constant 32 : index
    %96 = vector.load %arg6[%c0_29, %c32] : memref<16x256xf32, #tpu.memory_space<vmem>>, vector<16x32xf32>
    tpu.vector_store %arg6[%c0_29, %c32], %95 {strides = array<i32>} : memref<16x256xf32, #tpu.memory_space<vmem>>, vector<16x32xf32>,
    %97 = vector.extract_strided_slice %90 {offsets = [0, 2, 0], sizes = [16, 1, 32], strides = [1, 1, 1]} : vector<16x8x32xf32> to vector<16x1x32xf32>
    %98 = vector.shape_cast %97 : vector<16x1x32xf32> to vector<16x32xf32>
    %c0_30 = arith.constant 0 : index
    %c64 = arith.constant 64 : index
    %99 = vector.load %arg6[%c0_30, %c64] : memref<16x256xf32, #tpu.memory_space<vmem>>, vector<16x32xf32>
    tpu.vector_store %arg6[%c0_30, %c64], %98 {strides = array<i32>} : memref<16x256xf32, #tpu.memory_space<vmem>>, vector<16x32xf32>,
    %100 = vector.extract_strided_slice %90 {offsets = [0, 3, 0], sizes = [16, 1, 32], strides = [1, 1, 1]} : vector<16x8x32xf32> to vector<16x1x32xf32>
    %101 = vector.shape_cast %100 : vector<16x1x32xf32> to vector<16x32xf32>
    %c0_31 = arith.constant 0 : index
    %c96 = arith.constant 96 : index
    %102 = vector.load %arg6[%c0_31, %c96] : memref<16x256xf32, #tpu.memory_space<vmem>>, vector<16x32xf32>
    tpu.vector_store %arg6[%c0_31, %c96], %101 {strides = array<i32>} : memref<16x256xf32, #tpu.memory_space<vmem>>, vector<16x32xf32>,
    %103 = vector.extract_strided_slice %90 {offsets = [0, 4, 0], sizes = [16, 1, 32], strides = [1, 1, 1]} : vector<16x8x32xf32> to vector<16x1x32xf32>
    %104 = vector.shape_cast %103 : vector<16x1x32xf32> to vector<16x32xf32>
    %c0_32 = arith.constant 0 : index
    %c128 = arith.constant 128 : index
    %105 = vector.load %arg6[%c0_32, %c128] : memref<16x256xf32, #tpu.memory_space<vmem>>, vector<16x32xf32>
    tpu.vector_store %arg6[%c0_32, %c128], %104 {strides = array<i32>} : memref<16x256xf32, #tpu.memory_space<vmem>>, vector<16x32xf32>,
    %106 = vector.extract_strided_slice %90 {offsets = [0, 5, 0], sizes = [16, 1, 32], strides = [1, 1, 1]} : vector<16x8x32xf32> to vector<16x1x32xf32>
    %107 = vector.shape_cast %106 : vector<16x1x32xf32> to vector<16x32xf32>
    %c0_33 = arith.constant 0 : index
    %c160 = arith.constant 160 : index
    %108 = vector.load %arg6[%c0_33, %c160] : memref<16x256xf32, #tpu.memory_space<vmem>>, vector<16x32xf32>
    tpu.vector_store %arg6[%c0_33, %c160], %107 {strides = array<i32>} : memref<16x256xf32, #tpu.memory_space<vmem>>, vector<16x32xf32>,
    %109 = vector.extract_strided_slice %90 {offsets = [0, 6, 0], sizes = [16, 1, 32], strides = [1, 1, 1]} : vector<16x8x32xf32> to vector<16x1x32xf32>
    %110 = vector.shape_cast %109 : vector<16x1x32xf32> to vector<16x32xf32>
    %c0_34 = arith.constant 0 : index
    %c192 = arith.constant 192 : index
    %111 = vector.load %arg6[%c0_34, %c192] : memref<16x256xf32, #tpu.memory_space<vmem>>, vector<16x32xf32>
    tpu.vector_store %arg6[%c0_34, %c192], %110 {strides = array<i32>} : memref<16x256xf32, #tpu.memory_space<vmem>>, vector<16x32xf32>,
    %112 = vector.extract_strided_slice %90 {offsets = [0, 7, 0], sizes = [16, 1, 32], strides = [1, 1, 1]} : vector<16x8x32xf32> to vector<16x1x32xf32>
    %113 = vector.shape_cast %112 : vector<16x1x32xf32> to vector<16x32xf32>
    %c0_35 = arith.constant 0 : index
    %c224 = arith.constant 224 : index
    %114 = vector.load %arg6[%c0_35, %c224] : memref<16x256xf32, #tpu.memory_space<vmem>>, vector<16x32xf32>
    tpu.vector_store %arg6[%c0_35, %c224], %113 {strides = array<i32>} : memref<16x256xf32, #tpu.memory_space<vmem>>, vector<16x32xf32>,
    return
  }
  func.func @transform_0(%arg0: i32) -> (i32, i32, i32) {
    %c0_i32 = arith.constant 0 : i32
    %c0_i32_0 = arith.constant 0 : i32
    %c0_i32_1 = arith.constant 0 : i32
    return %arg0, %c0_i32, %c0_i32_0 : i32, i32, i32
  }
  func.func @transform_1(%arg0: i32) -> (i32, i32) {
    %c0_i32 = arith.constant 0 : i32
    %c0_i32_0 = arith.constant 0 : i32
    %c0_i32_1 = arith.constant 0 : i32
    return %c0_i32, %c0_i32_0 : i32, i32
  }
  func.func @transform_2(%arg0: i32) -> (i32, i32) {
    %c0_i32 = arith.constant 0 : i32
    %c0_i32_0 = arith.constant 0 : i32
    %c0_i32_1 = arith.constant 0 : i32
    return %c0_i32, %c0_i32_0 : i32, i32
  }
  func.func @transform_3(%arg0: i32) -> (i32, i32) {
    %c0_i32 = arith.constant 0 : i32
    %c0_i32_0 = arith.constant 0 : i32
    %c0_i32_1 = arith.constant 0 : i32
    return %c0_i32, %c0_i32_0 : i32, i32
  }
  func.func @transform_4(%arg0: i32) -> (i32, i32) {
    %c0_i32 = arith.constant 0 : i32
    %c0_i32_0 = arith.constant 0 : i32
    %c0_i32_1 = arith.constant 0 : i32
    return %c0_i32, %c0_i32_0 : i32, i32
  }
  func.func @transform_5(%arg0: i32) -> (i32, i32) {
    %c0_i32 = arith.constant 0 : i32
    %c0_i32_0 = arith.constant 0 : i32
    return %arg0, %c0_i32 : i32, i32
  }
}

</mosaic_0001>

<llo_original>
// kernel: tpu_custom_call.1
$region0: #{tpu_custom_call.1}
  #allocation0 [shape = 'u32[]', space=smem, size = 0x4, offset = 0x4, fixed_abs, tag = 'smem constant byte address 0x4 - core index']
  #allocation1 [shape = 'u32[144,128]{1,0:T(1,128)}', space=vmem, size = 0x12000, scoped, tag = 'internal scratch']
  %s0 = inlined_call_operand.hbm [shape: bf16[16,8,32], index: 0, kind: input, shape index: {}]
  %s1 = inlined_call_operand.hbm [shape: bf16[32,96], index: 1, kind: input, shape index: {}]
  %s2 = inlined_call_operand.hbm [shape: bf16[32,32], index: 2, kind: input, shape index: {}]
  %s3 = inlined_call_operand.vmem [shape: f32[1,32], index: 3, kind: input, shape index: {}]
  %s4 = inlined_call_operand.hbm [shape: f32[128,128], index: 4, kind: input, shape index: {}]
  %s5 = inlined_call_operand.hbm [shape: f32[16,256], index: 5, kind: output, shape index: {}]
  %s6 = sld [smem:[#allocation0]]
  $region46: #{tpu_custom_call.1} parent=0
    _
  %s8 = ssub.s32 1, %s6
  %s9 = scalar_select 0, %s8, %s6
  $region1: #{tpu_custom_call.1} parent=0
    #allocation2 [shape = 'u8[32768]{0}', space=vmem, size = 0x8000, scoped, tag = 'input window, operand 0, single buffered']
    #allocation3 [shape = 's32[1]{0}', space=sflag, size = 0x4, scoped, tag = 'scoped memory for tpu_custom_call.1']
    #allocation4 [shape = 's32[1]{0}', space=sflag, size = 0x4, scoped, tag = 'scoped memory for tpu_custom_call.1']
    #allocation5 [shape = 'u8[8192]{0}', space=vmem, size = 0x2000, scoped, tag = 'input window, operand 1, single buffered']
    #allocation6 [shape = 's32[1]{0}', space=sflag, size = 0x4, scoped, tag = 'scoped memory for tpu_custom_call.1']
    #allocation7 [shape = 'u8[8192]{0}', space=vmem, size = 0x2000, scoped, tag = 'input window, operand 2, single buffered']
    #allocation8 [shape = 'u8[65536]{0}', space=vmem, size = 0x10000, scoped, tag = 'input window, operand 4, single buffered']
    #allocation9 [shape = 's32[1]{0}', space=sflag, size = 0x4, scoped, tag = 'scoped memory for tpu_custom_call.1']
    #allocation10 [shape = 'u8[16384]{0}', space=vmem, size = 0x4000, scoped, tag = 'output window, operand 0, single buffered']
    %10 = vsyncpa [#allocation3], 0
    %11 = vsyncpa [#allocation6], 0
    %12 = vsyncpa [#allocation9], 0
    %13 = vsyncpa [#allocation4], 0
    // Predicated region
    $region2: #{tpu_custom_call.1} parent=1 // pred_check
      _
    $region3: #{tpu_custom_call.1} parent=1 // pred_check_branch
      %15 = sbr.rel (0) target = $region5
    $region4: #{tpu_custom_call.1} parent=1 // pred_region
      %s17 = ssub.s32 1024, 1024
      %18 = vsyncadd [#allocation3], %s17
      %s19 = sshll.u32 [#allocation2], 4
      %s20 = int_to_ptr.vmem [resolvable:$true] %s19
      %25 = dma.hbm_to_vmem [thread:$0]  %s0, 1024, %s20, [#allocation3], 64, 64, 4
    $region5: #{tpu_custom_call.1} parent=1 // pred_fallthru
      _
    // Predicated region
    $region6: #{tpu_custom_call.1} parent=1 // pred_check
      _
    $region7: #{tpu_custom_call.1} parent=1 // pred_check_branch
      %27 = sbr.rel (0) target = $region9
    $region8: #{tpu_custom_call.1} parent=1 // pred_region
      %s29 = ssub.s32 256, 256
      %30 = vsyncadd [#allocation6], %s29
      %s31 = sshll.u32 [#allocation5], 4
      %s32 = int_to_ptr.vmem [resolvable:$true] %s31
      %37 = dma.hbm_to_vmem [thread:$0]  %s1, 256, %s32, [#allocation6], 64, 64, 4
    $region9: #{tpu_custom_call.1} parent=1 // pred_fallthru
      _
    // Predicated region
    $region10: #{tpu_custom_call.1} parent=1 // pred_check
      _
    $region11: #{tpu_custom_call.1} parent=1 // pred_check_branch
      %39 = sbr.rel (0) target = $region13
    $region12: #{tpu_custom_call.1} parent=1 // pred_region
      %s41 = ssub.s32 256, 256
      %42 = vsyncadd [#allocation6], %s41
      %s43 = sshll.u32 [#allocation7], 4
      %s44 = int_to_ptr.vmem [resolvable:$true] %s43
      %49 = dma.hbm_to_vmem [thread:$0]  %s2, 256, %s44, [#allocation6], 64, 64, 4
    $region13: #{tpu_custom_call.1} parent=1 // pred_fallthru
      _
    // Predicated region
    $region14: #{tpu_custom_call.1} parent=1 // pred_check
      _
    $region15: #{tpu_custom_call.1} parent=1 // pred_check_branch
      %51 = sbr.rel (0) target = $region17
    $region16: #{tpu_custom_call.1} parent=1 // pred_region
      _
    $region17: #{tpu_custom_call.1} parent=1 // pred_fallthru
      _
    // Predicated region
    $region18: #{tpu_custom_call.1} parent=1 // pred_check
      _
    $region19: #{tpu_custom_call.1} parent=1 // pred_check_branch
      %53 = sbr.rel (0) target = $region21
    $region20: #{tpu_custom_call.1} parent=1 // pred_region
      %s55 = ssub.s32 2048, 2048
      %56 = vsyncadd [#allocation9], %s55
      %s57 = sshll.u32 [#allocation8], 4
      %s58 = int_to_ptr.vmem [resolvable:$true] %s57
      %63 = dma.hbm_to_vmem [thread:$0]  %s4, 2048, %s58, [#allocation9], 128, 128, 8
    $region21: #{tpu_custom_call.1} parent=1 // pred_fallthru
      _
    // Predicated region
    $region22: #{tpu_custom_call.1} parent=1 // pred_check
      _
    $region23: #{tpu_custom_call.1} parent=1 // pred_check_branch
      %65 = sbr.rel (0) target = $region25
    $region24: #{tpu_custom_call.1} parent=1 // pred_region
      %66 = dma.done [#allocation3], 1024
    $region25: #{tpu_custom_call.1} parent=1 // pred_fallthru
      _
    // Predicated region
    $region26: #{tpu_custom_call.1} parent=1 // pred_check
      _
    $region27: #{tpu_custom_call.1} parent=1 // pred_check_branch
      %68 = sbr.rel (0) target = $region29
    $region28: #{tpu_custom_call.1} parent=1 // pred_region
      %69 = dma.done [#allocation6], 256
    $region29: #{tpu_custom_call.1} parent=1 // pred_fallthru
      _
    // Predicated region
    $region30: #{tpu_custom_call.1} parent=1 // pred_check
      _
    $region31: #{tpu_custom_call.1} parent=1 // pred_check_branch
      %71 = sbr.rel (0) target = $region33
    $region32: #{tpu_custom_call.1} parent=1 // pred_region
      %72 = dma.done [#allocation6], 256
    $region33: #{tpu_custom_call.1} parent=1 // pred_fallthru
      _
    // Predicated region
    $region34: #{tpu_custom_call.1} parent=1 // pred_check
      _
    $region35: #{tpu_custom_call.1} parent=1 // pred_check_branch
      %74 = sbr.rel (0) target = $region37
    $region36: #{tpu_custom_call.1} parent=1 // pred_region
      %75 = dma.done [#allocation9], 2048
    $region37: #{tpu_custom_call.1} parent=1 // pred_fallthru
      _
    %v77 = vld [vmem:[#allocation2] sm:$0xf]
    %v78 = vld [vmem:[#allocation2 + $0x4] sm:$0xf]
    %v79 = vld [vmem:[#allocation2 + $0x8] sm:$0xf]
    %v80 = vld [vmem:[#allocation2 + $0xc] sm:$0xf]
    %v81 = vld [vmem:[#allocation2 + $0x10] sm:$0xf]
    %v82 = vld [vmem:[#allocation2 + $0x14] sm:$0xf]
    %v83 = vld [vmem:[#allocation2 + $0x18] sm:$0xf]
    %v84 = vld [vmem:[#allocation2 + $0x1c] sm:$0xf]
    %v85 = vld [vmem:[#allocation2 + $0x20] sm:$0xf]
    %v86 = vld [vmem:[#allocation2 + $0x24] sm:$0xf]
    %v87 = vld [vmem:[#allocation2 + $0x28] sm:$0xf]
    %v88 = vld [vmem:[#allocation2 + $0x2c] sm:$0xf]
    %v89 = vld [vmem:[#allocation2 + $0x30] sm:$0xf]
    %v90 = vld [vmem:[#allocation2 + $0x34] sm:$0xf]
    %v91 = vld [vmem:[#allocation2 + $0x38] sm:$0xf]
    %v92 = vld [vmem:[#allocation2 + $0x3c] sm:$0xf]
    %v93 = vld [vmem:[#allocation5] sm:$0xf]
    %v94 = vld [vmem:[#allocation5 + $0x4] sm:$0xf]
    %v95 = vld [vmem:[#allocation5 + $0x8] sm:$0xf]
    %v96 = vld [vmem:[#allocation5 + $0xc] sm:$0xf]
    %v113 = vunpack.c.l.b16 %v77
    %v114 = vunpack.c.l.b16 %v78
    %v115 = vunpack.c.l.b16 %v79
    %v116 = vunpack.c.l.b16 %v80
    %v117 = vunpack.c.l.b16 %v81
    %v118 = vunpack.c.l.b16 %v82
    %v119 = vunpack.c.l.b16 %v83
    %v120 = vunpack.c.l.b16 %v84
    %v121 = vunpack.c.l.b16 %v85
    %v122 = vunpack.c.l.b16 %v86
    %v123 = vunpack.c.l.b16 %v87
    %v124 = vunpack.c.l.b16 %v88
    %v125 = vunpack.c.l.b16 %v89
    %v126 = vunpack.c.l.b16 %v90
    %v127 = vunpack.c.l.b16 %v91
    %v128 = vunpack.c.l.b16 %v92
    %v129 = vpack.c.b16 %v114, %v113
    %v130 = vpack.c.b16 %v116, %v115
    %v131 = vpack.c.b16 %v118, %v117
    %v132 = vpack.c.b16 %v120, %v119
    %v133 = vpack.c.b16 %v122, %v121
    %v134 = vpack.c.b16 %v124, %v123
    %v135 = vpack.c.b16 %v126, %v125
    %v136 = vpack.c.b16 %v128, %v127
    %v141 = vunpack.c.l.b16 %v93
    %v142 = vunpack.c.l.b16 %v94
    %v143 = vunpack.c.l.b16 %v95
    %v144 = vunpack.c.l.b16 %v96
    %v145 = vpack.c.b16 %v142, %v141
    %v146 = vpack.c.b16 %v144, %v143
    %vm149 = vcmask 261120
    %v151 = vsel %vm149, %v129, 0
    %v154 = vsel %vm149, %v130, 0
    %v157 = vsel %vm149, %v131, 0
    %v160 = vsel %vm149, %v132, 0
    %v163 = vsel %vm149, %v133, 0
    %v166 = vsel %vm149, %v134, 0
    %v169 = vsel %vm149, %v135, 0
    %v172 = vsel %vm149, %v136, 0
    %174 = vmatprep.subr.bf16.mxu0 0
    %175 = vmatpush1.bf16.msra.mxu0 %v145
    %176 = vmatprep.subr.bf16.mxu0 0
    %177 = vmatpush1.bf16.msra.mxu0 %v146
    %178 = vmatprep.subr.bf16.mxu0 0
    %179 = vmatpush1.bf16.msra.mxu0 0
    %180 = vmatprep.subr.bf16.mxu0 0
    %181 = vmatpush1.bf16.msra.mxu0 0
    %182 = vmatprep.subr.bf16.mxu0 0
    %183 = vmatpush1.bf16.msra.mxu0 0
    %184 = vmatprep.subr.bf16.mxu0 0
    %185 = vmatpush1.bf16.msra.mxu0 0
    %186 = vmatprep.subr.bf16.mxu0 0
    %187 = vmatpush1.bf16.msra.mxu0 0
    %188 = vmatprep.subr.bf16.mxu0 0
    %189 = vmatpush1.bf16.msra.mxu0 0
    %190 = vmatprep.subr.bf16.mxu0 0
    %191 = vmatpush1.bf16.msra.mxu0 0
    %192 = vmatprep.subr.bf16.mxu0 0
    %193 = vmatpush1.bf16.msra.mxu0 0
    %194 = vmatprep.subr.bf16.mxu0 0
    %195 = vmatpush1.bf16.msra.mxu0 0
    %196 = vmatprep.subr.bf16.mxu0 0
    %197 = vmatpush1.bf16.msra.mxu0 0
    %198 = vmatprep.subr.bf16.mxu0 0
    %199 = vmatpush1.bf16.msra.mxu0 0
    %200 = vmatprep.subr.bf16.mxu0 0
    %201 = vmatpush1.bf16.msra.mxu0 0
    %202 = vmatprep.subr.bf16.mxu0 0
    %203 = vmatpush1.bf16.msra.mxu0 0
    %204 = vmatprep.subr.bf16.mxu0 0
    %205 = vmatpush1.bf16.msra.mxu0 0
    %206 = vmatprep.mubr.bf16.mxu0 0
    %207 = vmatmul.mubr.bf16.gmra.mrb[0].mxu0 %v151
    %v208 = vpop.f32.mrb[0].mxu0
    %v209 = vadd.f32 0.0, %v208
    %v210 = vpop.f32.mrb[0].mxu0
    %v211 = vpop.f32.mrb[0].mxu0
    %v212 = vadd.f32 0.0, %v211
    %v213 = vpop.f32.mrb[0].mxu0
    %214 = vmatprep.mubr.bf16.mxu0 0
    %215 = vmatmul.mubr.bf16.gmra.mrb[0].mxu0 %v154
    %v216 = vpop.f32.mrb[0].mxu0
    %v217 = vadd.f32 0.0, %v216
    %v218 = vpop.f32.mrb[0].mxu0
    %v219 = vpop.f32.mrb[0].mxu0
    %v220 = vadd.f32 0.0, %v219
    %v221 = vpop.f32.mrb[0].mxu0
    %222 = vmatprep.mubr.bf16.mxu0 0
    %223 = vmatmul.mubr.bf16.gmra.mrb[0].mxu0 %v157
    %v224 = vpop.f32.mrb[0].mxu0
    %v225 = vadd.f32 0.0, %v224
    %v226 = vpop.f32.mrb[0].mxu0
    %v227 = vpop.f32.mrb[0].mxu0
    %v228 = vadd.f32 0.0, %v227
    %v229 = vpop.f32.mrb[0].mxu0
    %230 = vmatprep.mubr.bf16.mxu0 0
    %231 = vmatmul.mubr.bf16.gmra.mrb[0].mxu0 %v160
    %v232 = vpop.f32.mrb[0].mxu0
    %v233 = vadd.f32 0.0, %v232
    %v234 = vpop.f32.mrb[0].mxu0
    %v235 = vpop.f32.mrb[0].mxu0
    %v236 = vadd.f32 0.0, %v235
    %v237 = vpop.f32.mrb[0].mxu0
    %238 = vmatprep.mubr.bf16.mxu0 0
    %239 = vmatmul.mubr.bf16.gmra.mrb[0].mxu0 %v163
    %v240 = vpop.f32.mrb[0].mxu0
    %v241 = vadd.f32 0.0, %v240
    %v242 = vpop.f32.mrb[0].mxu0
    %v243 = vpop.f32.mrb[0].mxu0
    %v244 = vadd.f32 0.0, %v243
    %v245 = vpop.f32.mrb[0].mxu0
    %246 = vmatprep.mubr.bf16.mxu0 0
    %247 = vmatmul.mubr.bf16.gmra.mrb[0].mxu0 %v166
    %v248 = vpop.f32.mrb[0].mxu0
    %v249 = vadd.f32 0.0, %v248
    %v250 = vpop.f32.mrb[0].mxu0
    %v251 = vpop.f32.mrb[0].mxu0
    %v252 = vadd.f32 0.0, %v251
    %v253 = vpop.f32.mrb[0].mxu0
    %254 = vmatprep.mubr.bf16.mxu0 0
    %255 = vmatmul.mubr.bf16.gmra.mrb[0].mxu0 %v169
    %v256 = vpop.f32.mrb[0].mxu0
    %v257 = vadd.f32 0.0, %v256
    %v258 = vpop.f32.mrb[0].mxu0
    %v259 = vpop.f32.mrb[0].mxu0
    %v260 = vadd.f32 0.0, %v259
    %v261 = vpop.f32.mrb[0].mxu0
    %262 = vmatprep.mubr.bf16.mxu0 0
    %263 = vmatmul.mubr.bf16.gmra.mrb[0].mxu0 %v172
    %v264 = vpop.f32.mrb[0].mxu0
    %v265 = vadd.f32 0.0, %v264
    %v266 = vpop.f32.mrb[0].mxu0
    %v267 = vpop.f32.mrb[0].mxu0
    %v268 = vadd.f32 0.0, %v267
    %v269 = vpop.f32.mrb[0].mxu0
    %270 = vdwg.mxu0
    %v271 = vpack.c.bf16 %v212, %v209
    %v272 = vpack.c.bf16 %v220, %v217
    %v273 = vpack.c.bf16 %v228, %v225
    %v274 = vpack.c.bf16 %v236, %v233
    %v275 = vpack.c.bf16 %v244, %v241
    %v276 = vpack.c.bf16 %v252, %v249
    %v277 = vpack.c.bf16 %v260, %v257
    %v278 = vpack.c.bf16 %v268, %v265
    %v279 = vld [vmem:[#allocation8] sm:$0xff]
    %v280 = vld [vmem:[#allocation8 + $0x8] sm:$0xff]
    %v281 = vld [vmem:[#allocation8 + $0x10] sm:$0xff]
    %v282 = vld [vmem:[#allocation8 + $0x18] sm:$0xff]
    %v283 = vld [vmem:[#allocation8 + $0x20] sm:$0xff]
    %v284 = vld [vmem:[#allocation8 + $0x28] sm:$0xff]
    %v285 = vld [vmem:[#allocation8 + $0x30] sm:$0xff]
    %v286 = vld [vmem:[#allocation8 + $0x38] sm:$0xff]
    %v287 = vld [vmem:[#allocation8 + $0x40] sm:$0xff]
    %v288 = vld [vmem:[#allocation8 + $0x48] sm:$0xff]
    %v289 = vld [vmem:[#allocation8 + $0x50] sm:$0xff]
    %v290 = vld [vmem:[#allocation8 + $0x58] sm:$0xff]
    %v291 = vld [vmem:[#allocation8 + $0x60] sm:$0xff]
    %v292 = vld [vmem:[#allocation8 + $0x68] sm:$0xff]
    %v293 = vld [vmem:[#allocation8 + $0x70] sm:$0xff]
    %v294 = vld [vmem:[#allocation8 + $0x78] sm:$0xff]
    %303 = vrot.lane.b32.xlu0 %v271, 96
    %v304 = vpop.permute.xlu0 %303
    %305 = vrot.lane.b32.xlu0 %v272, 96
    %v306 = vpop.permute.xlu0 %305
    %307 = vrot.lane.b32.xlu0 %v273, 96
    %v308 = vpop.permute.xlu0 %307
    %309 = vrot.lane.b32.xlu0 %v274, 96
    %v310 = vpop.permute.xlu0 %309
    %311 = vrot.lane.b32.xlu0 %v275, 96
    %v312 = vpop.permute.xlu0 %311
    %313 = vrot.lane.b32.xlu0 %v276, 96
    %v314 = vpop.permute.xlu0 %313
    %315 = vrot.lane.b32.xlu0 %v277, 96
    %v316 = vpop.permute.xlu0 %315
    %317 = vrot.lane.b32.xlu0 %v278, 96
    %v318 = vpop.permute.xlu0 %317
    %vm319 = vcmask 64512
    %v321 = vsel %vm319, %v271, 0
    %v324 = vsel %vm319, %v272, 0
    %v327 = vsel %vm319, %v273, 0
    %v330 = vsel %vm319, %v274, 0
    %v333 = vsel %vm319, %v275, 0
    %v336 = vsel %vm319, %v276, 0
    %v339 = vsel %vm319, %v277, 0
    %v342 = vsel %vm319, %v278, 0
    %v345 = vsel %vm319, %v304, 0
    %v348 = vsel %vm319, %v306, 0
    %v351 = vsel %vm319, %v308, 0
    %v354 = vsel %vm319, %v310, 0
    %v357 = vsel %vm319, %v312, 0
    %v360 = vsel %vm319, %v314, 0
    %v363 = vsel %vm319, %v316, 0
    %v366 = vsel %vm319, %v318, 0
    %368 = vmatprep.subr.bf16.mxu0 0
    %369 = vmatpush1.bf16.xpose.msra.mxu0 %v345
    %370 = vmatprep.subr.bf16.mxu0 0
    %371 = vmatpush1.bf16.xpose.msra.mxu0 %v348
    %372 = vmatprep.subr.bf16.mxu0 0
    %373 = vmatpush1.bf16.xpose.msra.mxu0 %v351
    %374 = vmatprep.subr.bf16.mxu0 0
    %375 = vmatpush1.bf16.xpose.msra.mxu0 %v354
    %376 = vmatprep.subr.bf16.mxu0 0
    %377 = vmatpush1.bf16.xpose.msra.mxu0 %v357
    %378 = vmatprep.subr.bf16.mxu0 0
    %379 = vmatpush1.bf16.xpose.msra.mxu0 %v360
    %380 = vmatprep.subr.bf16.mxu0 0
    %381 = vmatpush1.bf16.xpose.msra.mxu0 %v363
    %382 = vmatprep.subr.bf16.mxu0 0
    %383 = vmatpush1.bf16.xpose.msra.mxu0 %v366
    %384 = vmatprep.subr.bf16.mxu0 0
    %385 = vmatpush1.bf16.xpose.msra.mxu0 0
    %386 = vmatprep.subr.bf16.mxu0 0
    %387 = vmatpush1.bf16.xpose.msra.mxu0 0
    %388 = vmatprep.subr.bf16.mxu0 0
    %389 = vmatpush1.bf16.xpose.msra.mxu0 0
    %390 = vmatprep.subr.bf16.mxu0 0
    %391 = vmatpush1.bf16.xpose.msra.mxu0 0
    %392 = vmatprep.subr.bf16.mxu0 0
    %393 = vmatpush1.bf16.xpose.msra.mxu0 0
    %394 = vmatprep.subr.bf16.mxu0 0
    %395 = vmatpush1.bf16.xpose.msra.mxu0 0
    %396 = vmatprep.subr.bf16.mxu0 0
    %397 = vmatpush1.bf16.xpose.msra.mxu0 0
    %398 = vmatprep.subr.bf16.mxu0 0
    %399 = vmatpush1.bf16.xpose.msra.mxu0 0
    %400 = vmatprep.mubr.bf16.mxu0 0
    %401 = vmatmul.mubr.bf16.gmra.mrb[0].mxu0 %v321
    %v402 = vpop.f32.mrb[0].mxu0
    %v403 = vadd.f32 %v279, %v402
    %v404 = vpop.f32.mrb[0].mxu0
    %v405 = vpop.f32.mrb[0].mxu0
    %v406 = vadd.f32 %v280, %v405
    %v407 = vpop.f32.mrb[0].mxu0
    %408 = vmatprep.mubr.bf16.mxu0 0
    %409 = vmatmul.mubr.bf16.gmra.mrb[0].mxu0 %v324
    %v410 = vpop.f32.mrb[0].mxu0
    %v411 = vadd.f32 %v281, %v410
    %v412 = vpop.f32.mrb[0].mxu0
    %v413 = vpop.f32.mrb[0].mxu0
    %v414 = vadd.f32 %v282, %v413
    %v415 = vpop.f32.mrb[0].mxu0
    %416 = vmatprep.mubr.bf16.mxu0 0
    %417 = vmatmul.mubr.bf16.gmra.mrb[0].mxu0 %v327
    %v418 = vpop.f32.mrb[0].mxu0
    %v419 = vadd.f32 %v283, %v418
    %v420 = vpop.f32.mrb[0].mxu0
    %v421 = vpop.f32.mrb[0].mxu0
    %v422 = vadd.f32 %v284, %v421
    %v423 = vpop.f32.mrb[0].mxu0
    %424 = vmatprep.mubr.bf16.mxu0 0
    %425 = vmatmul.mubr.bf16.gmra.mrb[0].mxu0 %v330
    %v426 = vpop.f32.mrb[0].mxu0
    %v427 = vadd.f32 %v285, %v426
    %v428 = vpop.f32.mrb[0].mxu0
    %v429 = vpop.f32.mrb[0].mxu0
    %v430 = vadd.f32 %v286, %v429
    %v431 = vpop.f32.mrb[0].mxu0
    %432 = vmatprep.mubr.bf16.mxu0 0
    %433 = vmatmul.mubr.bf16.gmra.mrb[0].mxu0 %v333
    %v434 = vpop.f32.mrb[0].mxu0
    %v435 = vadd.f32 %v287, %v434
    %v436 = vpop.f32.mrb[0].mxu0
    %v437 = vpop.f32.mrb[0].mxu0
    %v438 = vadd.f32 %v288, %v437
    %v439 = vpop.f32.mrb[0].mxu0
    %440 = vmatprep.mubr.bf16.mxu0 0
    %441 = vmatmul.mubr.bf16.gmra.mrb[0].mxu0 %v336
    %v442 = vpop.f32.mrb[0].mxu0
    %v443 = vadd.f32 %v289, %v442
    %v444 = vpop.f32.mrb[0].mxu0
    %v445 = vpop.f32.mrb[0].mxu0
    %v446 = vadd.f32 %v290, %v445
    %v447 = vpop.f32.mrb[0].mxu0
    %448 = vmatprep.mubr.bf16.mxu0 0
    %449 = vmatmul.mubr.bf16.gmra.mrb[0].mxu0 %v339
    %v450 = vpop.f32.mrb[0].mxu0
    %v451 = vadd.f32 %v291, %v450
    %v452 = vpop.f32.mrb[0].mxu0
    %v453 = vpop.f32.mrb[0].mxu0
    %v454 = vadd.f32 %v292, %v453
    %v455 = vpop.f32.mrb[0].mxu0
    %456 = vmatprep.mubr.bf16.mxu0 0
    %457 = vmatmul.mubr.bf16.gmra.mrb[0].mxu0 %v342
    %v458 = vpop.f32.mrb[0].mxu0
    %v459 = vadd.f32 %v293, %v458
    %v460 = vpop.f32.mrb[0].mxu0
    %v461 = vpop.f32.mrb[0].mxu0
    %v462 = vadd.f32 %v294, %v461
    %v463 = vpop.f32.mrb[0].mxu0
    %464 = vdwg.mxu0
    %465 = vmax.xlane.f32.xlu0 %v403
    %v466 = vpop.xlane.xlu0 %465
    %467 = vmax.xlane.f32.xlu0 %v406
    %v468 = vpop.xlane.xlu0 %467
    %469 = vmax.xlane.f32.xlu0 %v411
    %v470 = vpop.xlane.xlu0 %469
    %471 = vmax.xlane.f32.xlu0 %v414
    %v472 = vpop.xlane.xlu0 %471
    %473 = vmax.xlane.f32.xlu0 %v419
    %v474 = vpop.xlane.xlu0 %473
    %475 = vmax.xlane.f32.xlu0 %v422
    %v476 = vpop.xlane.xlu0 %475
    %477 = vmax.xlane.f32.xlu0 %v427
    %v478 = vpop.xlane.xlu0 %477
    %479 = vmax.xlane.f32.xlu0 %v430
    %v480 = vpop.xlane.xlu0 %479
    %481 = vmax.xlane.f32.xlu0 %v435
    %v482 = vpop.xlane.xlu0 %481
    %483 = vmax.xlane.f32.xlu0 %v438
    %v484 = vpop.xlane.xlu0 %483
    %485 = vmax.xlane.f32.xlu0 %v443
    %v486 = vpop.xlane.xlu0 %485
    %487 = vmax.xlane.f32.xlu0 %v446
    %v488 = vpop.xlane.xlu0 %487
    %489 = vmax.xlane.f32.xlu0 %v451
    %v490 = vpop.xlane.xlu0 %489
    %491 = vmax.xlane.f32.xlu0 %v454
    %v492 = vpop.xlane.xlu0 %491
    %493 = vmax.xlane.f32.xlu0 %v459
    %v494 = vpop.xlane.xlu0 %493
    %495 = vmax.xlane.f32.xlu0 %v462
    %v496 = vpop.xlane.xlu0 %495
    %v497 = vsub.f32 %v403, %v466
    %v498 = vsub.f32 %v406, %v468
    %v499 = vsub.f32 %v411, %v470
    %v500 = vsub.f32 %v414, %v472
    %v501 = vsub.f32 %v419, %v474
    %v502 = vsub.f32 %v422, %v476
    %v503 = vsub.f32 %v427, %v478
    %v504 = vsub.f32 %v430, %v480
    %v505 = vsub.f32 %v435, %v482
    %v506 = vsub.f32 %v438, %v484
    %v507 = vsub.f32 %v443, %v486
    %v508 = vsub.f32 %v446, %v488
    %v509 = vsub.f32 %v451, %v490
    %v510 = vsub.f32 %v454, %v492
    %v511 = vsub.f32 %v459, %v494
    %v512 = vsub.f32 %v462, %v496
    %v513 = vmul.f32 %v497, 1.442695
    %v514 = vpow.pop %v513
    %v515 = vmul.f32 %v498, 1.442695
    %v516 = vpow.pop %v515
    %v517 = vmul.f32 %v499, 1.442695
    %v518 = vpow.pop %v517
    %v519 = vmul.f32 %v500, 1.442695
    %v520 = vpow.pop %v519
    %v521 = vmul.f32 %v501, 1.442695
    %v522 = vpow.pop %v521
    %v523 = vmul.f32 %v502, 1.442695
    %v524 = vpow.pop %v523
    %v525 = vmul.f32 %v503, 1.442695
    %v526 = vpow.pop %v525
    %v527 = vmul.f32 %v504, 1.442695
    %v528 = vpow.pop %v527
    %v529 = vmul.f32 %v505, 1.442695
    %v530 = vpow.pop %v529
    %v531 = vmul.f32 %v506, 1.442695
    %v532 = vpow.pop %v531
    %v533 = vmul.f32 %v507, 1.442695
    %v534 = vpow.pop %v533
    %v535 = vmul.f32 %v508, 1.442695
    %v536 = vpow.pop %v535
    %v537 = vmul.f32 %v509, 1.442695
    %v538 = vpow.pop %v537
    %v539 = vmul.f32 %v510, 1.442695
    %v540 = vpow.pop %v539
    %v541 = vmul.f32 %v511, 1.442695
    %v542 = vpow.pop %v541
    %v543 = vmul.f32 %v512, 1.442695
    %v544 = vpow.pop %v543
    %545 = vadd.xlane.f32.xlu0 %v514
    %v546 = vpop.xlane.xlu0 %545
    %547 = vadd.xlane.f32.xlu0 %v516
    %v548 = vpop.xlane.xlu0 %547
    %549 = vadd.xlane.f32.xlu0 %v518
    %v550 = vpop.xlane.xlu0 %549
    %551 = vadd.xlane.f32.xlu0 %v520
    %v552 = vpop.xlane.xlu0 %551
    %553 = vadd.xlane.f32.xlu0 %v522
    %v554 = vpop.xlane.xlu0 %553
    %555 = vadd.xlane.f32.xlu0 %v524
    %v556 = vpop.xlane.xlu0 %555
    %557 = vadd.xlane.f32.xlu0 %v526
    %v558 = vpop.xlane.xlu0 %557
    %559 = vadd.xlane.f32.xlu0 %v528
    %v560 = vpop.xlane.xlu0 %559
    %561 = vadd.xlane.f32.xlu0 %v530
    %v562 = vpop.xlane.xlu0 %561
    %563 = vadd.xlane.f32.xlu0 %v532
    %v564 = vpop.xlane.xlu0 %563
    %565 = vadd.xlane.f32.xlu0 %v534
    %v566 = vpop.xlane.xlu0 %565
    %567 = vadd.xlane.f32.xlu0 %v536
    %v568 = vpop.xlane.xlu0 %567
    %569 = vadd.xlane.f32.xlu0 %v538
    %v570 = vpop.xlane.xlu0 %569
    %571 = vadd.xlane.f32.xlu0 %v540
    %v572 = vpop.xlane.xlu0 %571
    %573 = vadd.xlane.f32.xlu0 %v542
    %v574 = vpop.xlane.xlu0 %573
    %575 = vadd.xlane.f32.xlu0 %v544
    %v576 = vpop.xlane.xlu0 %575
    %v577 = vrcp.pop %v546
    %v578 = vrcp.pop %v548
    %v579 = vrcp.pop %v550
    %v580 = vrcp.pop %v552
    %v581 = vrcp.pop %v554
    %v582 = vrcp.pop %v556
    %v583 = vrcp.pop %v558
    %v584 = vrcp.pop %v560
    %v585 = vrcp.pop %v562
    %v586 = vrcp.pop %v564
    %v587 = vrcp.pop %v566
    %v588 = vrcp.pop %v568
    %v589 = vrcp.pop %v570
    %v590 = vrcp.pop %v572
    %v591 = vrcp.pop %v574
    %v592 = vrcp.pop %v576
    %v593 = vmul.f32 %v514, %v577
    %v594 = vmul.f32 %v516, %v578
    %v595 = vmul.f32 %v518, %v579
    %v596 = vmul.f32 %v520, %v580
    %v597 = vmul.f32 %v522, %v581
    %v598 = vmul.f32 %v524, %v582
    %v599 = vmul.f32 %v526, %v583
    %v600 = vmul.f32 %v528, %v584
    %v601 = vmul.f32 %v530, %v585
    %v602 = vmul.f32 %v532, %v586
    %v603 = vmul.f32 %v534, %v587
    %v604 = vmul.f32 %v536, %v588
    %v605 = vmul.f32 %v538, %v589
    %v606 = vmul.f32 %v540, %v590
    %v607 = vmul.f32 %v542, %v591
    %v608 = vmul.f32 %v544, %v592
    %v609 = vpack.c.bf16 %v594, %v593
    %v610 = vpack.c.bf16 %v596, %v595
    %v611 = vpack.c.bf16 %v598, %v597
    %v612 = vpack.c.bf16 %v600, %v599
    %v613 = vpack.c.bf16 %v602, %v601
    %v614 = vpack.c.bf16 %v604, %v603
    %v615 = vpack.c.bf16 %v606, %v605
    %v616 = vpack.c.bf16 %v608, %v607
    %617 = vrot.lane.b32.xlu0 %v271, 64
    %v618 = vpop.permute.xlu0 %617
    %619 = vrot.lane.b32.xlu0 %v272, 64
    %v620 = vpop.permute.xlu0 %619
    %621 = vrot.lane.b32.xlu0 %v273, 64
    %v622 = vpop.permute.xlu0 %621
    %623 = vrot.lane.b32.xlu0 %v274, 64
    %v624 = vpop.permute.xlu0 %623
    %625 = vrot.lane.b32.xlu0 %v275, 64
    %v626 = vpop.permute.xlu0 %625
    %627 = vrot.lane.b32.xlu0 %v276, 64
    %v628 = vpop.permute.xlu0 %627
    %629 = vrot.lane.b32.xlu0 %v277, 64
    %v630 = vpop.permute.xlu0 %629
    %631 = vrot.lane.b32.xlu0 %v278, 64
    %v632 = vpop.permute.xlu0 %631
    %641 = vmatprep.subr.bf16.mxu0 0
    %642 = vmatpush1.bf16.msra.mxu0 %v618
    %643 = vmatprep.subr.bf16.mxu0 0
    %644 = vmatpush1.bf16.msra.mxu0 %v620
    %645 = vmatprep.subr.bf16.mxu0 0
    %646 = vmatpush1.bf16.msra.mxu0 %v622
    %647 = vmatprep.subr.bf16.mxu0 0
    %648 = vmatpush1.bf16.msra.mxu0 %v624
    %649 = vmatprep.subr.bf16.mxu0 0
    %650 = vmatpush1.bf16.msra.mxu0 %v626
    %651 = vmatprep.subr.bf16.mxu0 0
    %652 = vmatpush1.bf16.msra.mxu0 %v628
    %653 = vmatprep.subr.bf16.mxu0 0
    %654 = vmatpush1.bf16.msra.mxu0 %v630
    %655 = vmatprep.subr.bf16.mxu0 0
    %656 = vmatpush1.bf16.msra.mxu0 %v632
    %657 = vmatprep.subr.bf16.mxu0 0
    %658 = vmatpush1.bf16.msra.mxu0 0
    %659 = vmatprep.subr.bf16.mxu0 0
    %660 = vmatpush1.bf16.msra.mxu0 0
    %661 = vmatprep.subr.bf16.mxu0 0
    %662 = vmatpush1.bf16.msra.mxu0 0
    %663 = vmatprep.subr.bf16.mxu0 0
    %664 = vmatpush1.bf16.msra.mxu0 0
    %665 = vmatprep.subr.bf16.mxu0 0
    %666 = vmatpush1.bf16.msra.mxu0 0
    %667 = vmatprep.subr.bf16.mxu0 0
    %668 = vmatpush1.bf16.msra.mxu0 0
    %669 = vmatprep.subr.bf16.mxu0 0
    %670 = vmatpush1.bf16.msra.mxu0 0
    %671 = vmatprep.subr.bf16.mxu0 0
    %672 = vmatpush1.bf16.msra.mxu0 0
    %673 = vmatprep.mubr.bf16.mxu0 0
    %674 = vmatmul.mubr.bf16.gmra.mrb[0].mxu0 %v609
    %v675 = vpop.f32.mrb[0].mxu0
    %v676 = vadd.f32 0.0, %v675
    %v677 = vpop.f32.mrb[0].mxu0
    %v678 = vpop.f32.mrb[0].mxu0
    %v679 = vadd.f32 0.0, %v678
    %v680 = vpop.f32.mrb[0].mxu0
    %681 = vmatprep.mubr.bf16.mxu0 0
    %682 = vmatmul.mubr.bf16.gmra.mrb[0].mxu0 %v610
    %v683 = vpop.f32.mrb[0].mxu0
    %v684 = vadd.f32 0.0, %v683
    %v685 = vpop.f32.mrb[0].mxu0
    %v686 = vpop.f32.mrb[0].mxu0
    %v687 = vadd.f32 0.0, %v686
    %v688 = vpop.f32.mrb[0].mxu0
    %689 = vmatprep.mubr.bf16.mxu0 0
    %690 = vmatmul.mubr.bf16.gmra.mrb[0].mxu0 %v611
    %v691 = vpop.f32.mrb[0].mxu0
    %v692 = vadd.f32 0.0, %v691
    %v693 = vpop.f32.mrb[0].mxu0
    %v694 = vpop.f32.mrb[0].mxu0
    %v695 = vadd.f32 0.0, %v694
    %v696 = vpop.f32.mrb[0].mxu0
    %697 = vmatprep.mubr.bf16.mxu0 0
    %698 = vmatmul.mubr.bf16.gmra.mrb[0].mxu0 %v612
    %v699 = vpop.f32.mrb[0].mxu0
    %v700 = vadd.f32 0.0, %v699
    %v701 = vpop.f32.mrb[0].mxu0
    %v702 = vpop.f32.mrb[0].mxu0
    %v703 = vadd.f32 0.0, %v702
    %v704 = vpop.f32.mrb[0].mxu0
    %705 = vmatprep.mubr.bf16.mxu0 0
    %706 = vmatmul.mubr.bf16.gmra.mrb[0].mxu0 %v613
    %v707 = vpop.f32.mrb[0].mxu0
    %v708 = vadd.f32 0.0, %v707
    %v709 = vpop.f32.mrb[0].mxu0
    %v710 = vpop.f32.mrb[0].mxu0
    %v711 = vadd.f32 0.0, %v710
    %v712 = vpop.f32.mrb[0].mxu0
    %713 = vmatprep.mubr.bf16.mxu0 0
    %714 = vmatmul.mubr.bf16.gmra.mrb[0].mxu0 %v614
    %v715 = vpop.f32.mrb[0].mxu0
    %v716 = vadd.f32 0.0, %v715
    %v717 = vpop.f32.mrb[0].mxu0
    %v718 = vpop.f32.mrb[0].mxu0
    %v719 = vadd.f32 0.0, %v718
    %v720 = vpop.f32.mrb[0].mxu0
    %721 = vmatprep.mubr.bf16.mxu0 0
    %722 = vmatmul.mubr.bf16.gmra.mrb[0].mxu0 %v615
    %v723 = vpop.f32.mrb[0].mxu0
    %v724 = vadd.f32 0.0, %v723
    %v725 = vpop.f32.mrb[0].mxu0
    %v726 = vpop.f32.mrb[0].mxu0
    %v727 = vadd.f32 0.0, %v726
    %v728 = vpop.f32.mrb[0].mxu0
    %729 = vmatprep.mubr.bf16.mxu0 0
    %730 = vmatmul.mubr.bf16.gmra.mrb[0].mxu0 %v616
    %v731 = vpop.f32.mrb[0].mxu0
    %v732 = vadd.f32 0.0, %v731
    %v733 = vpop.f32.mrb[0].mxu0
    %v734 = vpop.f32.mrb[0].mxu0
    %v735 = vadd.f32 0.0, %v734
    %v736 = vpop.f32.mrb[0].mxu0
    %737 = vdwg.mxu0
    %v738 = vpack.c.bf16 %v679, %v676
    %v739 = vpack.c.bf16 %v687, %v684
    %v740 = vpack.c.bf16 %v695, %v692
    %v741 = vpack.c.bf16 %v703, %v700
    %v742 = vpack.c.bf16 %v711, %v708
    %v743 = vpack.c.bf16 %v719, %v716
    %v744 = vpack.c.bf16 %v727, %v724
    %v745 = vpack.c.bf16 %v735, %v732
    %746 = vrot.lane.b32.xlu0 %v271, 120
    %v747 = vpop.permute.xlu0 %746
    %748 = vrot.lane.b32.xlu0 %v272, 120
    %v749 = vpop.permute.xlu0 %748
    %750 = vrot.lane.b32.xlu0 %v273, 120
    %v751 = vpop.permute.xlu0 %750
    %752 = vrot.lane.b32.xlu0 %v274, 120
    %v753 = vpop.permute.xlu0 %752
    %754 = vrot.lane.b32.xlu0 %v275, 120
    %v755 = vpop.permute.xlu0 %754
    %756 = vrot.lane.b32.xlu0 %v276, 120
    %v757 = vpop.permute.xlu0 %756
    %758 = vrot.lane.b32.xlu0 %v277, 120
    %v759 = vpop.permute.xlu0 %758
    %760 = vrot.lane.b32.xlu0 %v278, 120
    %v761 = vpop.permute.xlu0 %760
    %762 = vrot.lane.b32.xlu0 %v271, 88
    %v763 = vpop.permute.xlu0 %762
    %764 = vrot.lane.b32.xlu0 %v272, 88
    %v765 = vpop.permute.xlu0 %764
    %766 = vrot.lane.b32.xlu0 %v273, 88
    %v767 = vpop.permute.xlu0 %766
    %768 = vrot.lane.b32.xlu0 %v274, 88
    %v769 = vpop.permute.xlu0 %768
    %770 = vrot.lane.b32.xlu0 %v275, 88
    %v771 = vpop.permute.xlu0 %770
    %772 = vrot.lane.b32.xlu0 %v276, 88
    %v773 = vpop.permute.xlu0 %772
    %774 = vrot.lane.b32.xlu0 %v277, 88
    %v775 = vpop.permute.xlu0 %774
    %776 = vrot.lane.b32.xlu0 %v278, 88
    %v777 = vpop.permute.xlu0 %776
    %v779 = vsel %vm319, %v747, 0
    %v782 = vsel %vm319, %v749, 0
    %v785 = vsel %vm319, %v751, 0
    %v788 = vsel %vm319, %v753, 0
    %v791 = vsel %vm319, %v755, 0
    %v794 = vsel %vm319, %v757, 0
    %v797 = vsel %vm319, %v759, 0
    %v800 = vsel %vm319, %v761, 0
    %v803 = vsel %vm319, %v763, 0
    %v806 = vsel %vm319, %v765, 0
    %v809 = vsel %vm319, %v767, 0
    %v812 = vsel %vm319, %v769, 0
    %v815 = vsel %vm319, %v771, 0
    %v818 = vsel %vm319, %v773, 0
    %v821 = vsel %vm319, %v775, 0
    %v824 = vsel %vm319, %v777, 0
    %826 = vmatprep.subr.bf16.mxu0 0
    %827 = vmatpush1.bf16.xpose.msra.mxu0 %v803
    %828 = vmatprep.subr.bf16.mxu0 0
    %829 = vmatpush1.bf16.xpose.msra.mxu0 %v806
    %830 = vmatprep.subr.bf16.mxu0 0
    %831 = vmatpush1.bf16.xpose.msra.mxu0 %v809
    %832 = vmatprep.subr.bf16.mxu0 0
    %833 = vmatpush1.bf16.xpose.msra.mxu0 %v812
    %834 = vmatprep.subr.bf16.mxu0 0
    %835 = vmatpush1.bf16.xpose.msra.mxu0 %v815
    %836 = vmatprep.subr.bf16.mxu0 0
    %837 = vmatpush1.bf16.xpose.msra.mxu0 %v818
    %838 = vmatprep.subr.bf16.mxu0 0
    %839 = vmatpush1.bf16.xpose.msra.mxu0 %v821
    %840 = vmatprep.subr.bf16.mxu0 0
    %841 = vmatpush1.bf16.xpose.msra.mxu0 %v824
    %842 = vmatprep.subr.bf16.mxu0 0
    %843 = vmatpush1.bf16.xpose.msra.mxu0 0
    %844 = vmatprep.subr.bf16.mxu0 0
    %845 = vmatpush1.bf16.xpose.msra.mxu0 0
    %846 = vmatprep.subr.bf16.mxu0 0
    %847 = vmatpush1.bf16.xpose.msra.mxu0 0
    %848 = vmatprep.subr.bf16.mxu0 0
    %849 = vmatpush1.bf16.xpose.msra.mxu0 0
    %850 = vmatprep.subr.bf16.mxu0 0
    %851 = vmatpush1.bf16.xpose.msra.mxu0 0
    %852 = vmatprep.subr.bf16.mxu0 0
    %853 = vmatpush1.bf16.xpose.msra.mxu0 0
    %854 = vmatprep.subr.bf16.mxu0 0
    %855 = vmatpush1.bf16.xpose.msra.mxu0 0
    %856 = vmatprep.subr.bf16.mxu0 0
    %857 = vmatpush1.bf16.xpose.msra.mxu0 0
    %858 = vmatprep.mubr.bf16.mxu0 0
    %859 = vmatmul.mubr.bf16.gmra.mrb[0].mxu0 %v779
    %v860 = vpop.f32.mrb[0].mxu0
    %v861 = vadd.f32 %v279, %v860
    %v862 = vpop.f32.mrb[0].mxu0
    %v863 = vpop.f32.mrb[0].mxu0
    %v864 = vadd.f32 %v280, %v863
    %v865 = vpop.f32.mrb[0].mxu0
    %866 = vmatprep.mubr.bf16.mxu0 0
    %867 = vmatmul.mubr.bf16.gmra.mrb[0].mxu0 %v782
    %v868 = vpop.f32.mrb[0].mxu0
    %v869 = vadd.f32 %v281, %v868
    %v870 = vpop.f32.mrb[0].mxu0
    %v871 = vpop.f32.mrb[0].mxu0
    %v872 = vadd.f32 %v282, %v871
    %v873 = vpop.f32.mrb[0].mxu0
    %874 = vmatprep.mubr.bf16.mxu0 0
    %875 = vmatmul.mubr.bf16.gmra.mrb[0].mxu0 %v785
    %v876 = vpop.f32.mrb[0].mxu0
    %v877 = vadd.f32 %v283, %v876
    %v878 = vpop.f32.mrb[0].mxu0
    %v879 = vpop.f32.mrb[0].mxu0
    %v880 = vadd.f32 %v284, %v879
    %v881 = vpop.f32.mrb[0].mxu0
    %882 = vmatprep.mubr.bf16.mxu0 0
    %883 = vmatmul.mubr.bf16.gmra.mrb[0].mxu0 %v788
    %v884 = vpop.f32.mrb[0].mxu0
    %v885 = vadd.f32 %v285, %v884
    %v886 = vpop.f32.mrb[0].mxu0
    %v887 = vpop.f32.mrb[0].mxu0
    %v888 = vadd.f32 %v286, %v887
    %v889 = vpop.f32.mrb[0].mxu0
    %890 = vmatprep.mubr.bf16.mxu0 0
    %891 = vmatmul.mubr.bf16.gmra.mrb[0].mxu0 %v791
    %v892 = vpop.f32.mrb[0].mxu0
    %v893 = vadd.f32 %v287, %v892
    %v894 = vpop.f32.mrb[0].mxu0
    %v895 = vpop.f32.mrb[0].mxu0
    %v896 = vadd.f32 %v288, %v895
    %v897 = vpop.f32.mrb[0].mxu0
    %898 = vmatprep.mubr.bf16.mxu0 0
    %899 = vmatmul.mubr.bf16.gmra.mrb[0].mxu0 %v794
    %v900 = vpop.f32.mrb[0].mxu0
    %v901 = vadd.f32 %v289, %v900
    %v902 = vpop.f32.mrb[0].mxu0
    %v903 = vpop.f32.mrb[0].mxu0
    %v904 = vadd.f32 %v290, %v903
    %v905 = vpop.f32.mrb[0].mxu0
    %906 = vmatprep.mubr.bf16.mxu0 0
    %907 = vmatmul.mubr.bf16.gmra.mrb[0].mxu0 %v797
    %v908 = vpop.f32.mrb[0].mxu0
    %v909 = vadd.f32 %v291, %v908
    %v910 = vpop.f32.mrb[0].mxu0
    %v911 = vpop.f32.mrb[0].mxu0
    %v912 = vadd.f32 %v292, %v911
    %v913 = vpop.f32.mrb[0].mxu0
    %914 = vmatprep.mubr.bf16.mxu0 0
    %915 = vmatmul.mubr.bf16.gmra.mrb[0].mxu0 %v800
    %v916 = vpop.f32.mrb[0].mxu0
    %v917 = vadd.f32 %v293, %v916
    %v918 = vpop.f32.mrb[0].mxu0
    %v919 = vpop.f32.mrb[0].mxu0
    %v920 = vadd.f32 %v294, %v919
    %v921 = vpop.f32.mrb[0].mxu0
    %922 = vdwg.mxu0
    %923 = vmax.xlane.f32.xlu0 %v861
    %v924 = vpop.xlane.xlu0 %923
    %925 = vmax.xlane.f32.xlu0 %v864
    %v926 = vpop.xlane.xlu0 %925
    %927 = vmax.xlane.f32.xlu0 %v869
    %v928 = vpop.xlane.xlu0 %927
    %929 = vmax.xlane.f32.xlu0 %v872
    %v930 = vpop.xlane.xlu0 %929
    %931 = vmax.xlane.f32.xlu0 %v877
    %v932 = vpop.xlane.xlu0 %931
    %933 = vmax.xlane.f32.xlu0 %v880
    %v934 = vpop.xlane.xlu0 %933
    %935 = vmax.xlane.f32.xlu0 %v885
    %v936 = vpop.xlane.xlu0 %935
    %937 = vmax.xlane.f32.xlu0 %v888
    %v938 = vpop.xlane.xlu0 %937
    %939 = vmax.xlane.f32.xlu0 %v893
    %v940 = vpop.xlane.xlu0 %939
    %941 = vmax.xlane.f32.xlu0 %v896
    %v942 = vpop.xlane.xlu0 %941
    %943 = vmax.xlane.f32.xlu0 %v901
    %v944 = vpop.xlane.xlu0 %943
    %945 = vmax.xlane.f32.xlu0 %v904
    %v946 = vpop.xlane.xlu0 %945
    %947 = vmax.xlane.f32.xlu0 %v909
    %v948 = vpop.xlane.xlu0 %947
    %949 = vmax.xlane.f32.xlu0 %v912
    %v950 = vpop.xlane.xlu0 %949
    %951 = vmax.xlane.f32.xlu0 %v917
    %v952 = vpop.xlane.xlu0 %951
    %953 = vmax.xlane.f32.xlu0 %v920
    %v954 = vpop.xlane.xlu0 %953
    %v955 = vsub.f32 %v861, %v924
    %v956 = vsub.f32 %v864, %v926
    %v957 = vsub.f32 %v869, %v928
    %v958 = vsub.f32 %v872, %v930
    %v959 = vsub.f32 %v877, %v932
    %v960 = vsub.f32 %v880, %v934
    %v961 = vsub.f32 %v885, %v936
    %v962 = vsub.f32 %v888, %v938
    %v963 = vsub.f32 %v893, %v940
    %v964 = vsub.f32 %v896, %v942
    %v965 = vsub.f32 %v901, %v944
    %v966 = vsub.f32 %v904, %v946
    %v967 = vsub.f32 %v909, %v948
    %v968 = vsub.f32 %v912, %v950
    %v969 = vsub.f32 %v917, %v952
    %v970 = vsub.f32 %v920, %v954
    %v971 = vmul.f32 %v955, 1.442695
    %v972 = vpow.pop %v971
    %v973 = vmul.f32 %v956, 1.442695
    %v974 = vpow.pop %v973
    %v975 = vmul.f32 %v957, 1.442695
    %v976 = vpow.pop %v975
    %v977 = vmul.f32 %v958, 1.442695
    %v978 = vpow.pop %v977
    %v979 = vmul.f32 %v959, 1.442695
    %v980 = vpow.pop %v979
    %v981 = vmul.f32 %v960, 1.442695
    %v982 = vpow.pop %v981
    %v983 = vmul.f32 %v961, 1.442695
    %v984 = vpow.pop %v983
    %v985 = vmul.f32 %v962, 1.442695
    %v986 = vpow.pop %v985
    %v987 = vmul.f32 %v963, 1.442695
    %v988 = vpow.pop %v987
    %v989 = vmul.f32 %v964, 1.442695
    %v990 = vpow.pop %v989
    %v991 = vmul.f32 %v965, 1.442695
    %v992 = vpow.pop %v991
    %v993 = vmul.f32 %v966, 1.442695
    %v994 = vpow.pop %v993
    %v995 = vmul.f32 %v967, 1.442695
    %v996 = vpow.pop %v995
    %v997 = vmul.f32 %v968, 1.442695
    %v998 = vpow.pop %v997
    %v999 = vmul.f32 %v969, 1.442695
    %v1000 = vpow.pop %v999
    %v1001 = vmul.f32 %v970, 1.442695
    %v1002 = vpow.pop %v1001
    %1003 = vadd.xlane.f32.xlu0 %v972
    %v1004 = vpop.xlane.xlu0 %1003
    %1005 = vadd.xlane.f32.xlu0 %v974
    %v1006 = vpop.xlane.xlu0 %1005
    %1007 = vadd.xlane.f32.xlu0 %v976
    %v1008 = vpop.xlane.xlu0 %1007
    %1009 = vadd.xlane.f32.xlu0 %v978
    %v1010 = vpop.xlane.xlu0 %1009
    %1011 = vadd.xlane.f32.xlu0 %v980
    %v1012 = vpop.xlane.xlu0 %1011
    %1013 = vadd.xlane.f32.xlu0 %v982
    %v1014 = vpop.xlane.xlu0 %1013
    %1015 = vadd.xlane.f32.xlu0 %v984
    %v1016 = vpop.xlane.xlu0 %1015
    %1017 = vadd.xlane.f32.xlu0 %v986
    %v1018 = vpop.xlane.xlu0 %1017
    %1019 = vadd.xlane.f32.xlu0 %v988
    %v1020 = vpop.xlane.xlu0 %1019
    %1021 = vadd.xlane.f32.xlu0 %v990
    %v1022 = vpop.xlane.xlu0 %1021
    %1023 = vadd.xlane.f32.xlu0 %v992
    %v1024 = vpop.xlane.xlu0 %1023
    %1025 = vadd.xlane.f32.xlu0 %v994
    %v1026 = vpop.xlane.xlu0 %1025
    %1027 = vadd.xlane.f32.xlu0 %v996
    %v1028 = vpop.xlane.xlu0 %1027
    %1029 = vadd.xlane.f32.xlu0 %v998
    %v1030 = vpop.xlane.xlu0 %1029
    %1031 = vadd.xlane.f32.xlu0 %v1000
    %v1032 = vpop.xlane.xlu0 %1031
    %1033 = vadd.xlane.f32.xlu0 %v1002
    %v1034 = vpop.xlane.xlu0 %1033
    %v1035 = vrcp.pop %v1004
    %v1036 = vrcp.pop %v1006
    %v1037 = vrcp.pop %v1008
    %v1038 = vrcp.pop %v1010
    %v1039 = vrcp.pop %v1012
    %v1040 = vrcp.pop %v1014
    %v1041 = vrcp.pop %v1016
    %v1042 = vrcp.pop %v1018
    %v1043 = vrcp.pop %v1020
    %v1044 = vrcp.pop %v1022
    %v1045 = vrcp.pop %v1024
    %v1046 = vrcp.pop %v1026
    %v1047 = vrcp.pop %v1028
    %v1048 = vrcp.pop %v1030
    %v1049 = vrcp.pop %v1032
    %v1050 = vrcp.pop %v1034
    %v1051 = vmul.f32 %v972, %v1035
    %v1052 = vmul.f32 %v974, %v1036
    %v1053 = vmul.f32 %v976, %v1037
    %v1054 = vmul.f32 %v978, %v1038
    %v1055 = vmul.f32 %v980, %v1039
    %v1056 = vmul.f32 %v982, %v1040
    %v1057 = vmul.f32 %v984, %v1041
    %v1058 = vmul.f32 %v986, %v1042
    %v1059 = vmul.f32 %v988, %v1043
    %v1060 = vmul.f32 %v990, %v1044
    %v1061 = vmul.f32 %v992, %v1045
    %v1062 = vmul.f32 %v994, %v1046
    %v1063 = vmul.f32 %v996, %v1047
    %v1064 = vmul.f32 %v998, %v1048
    %v1065 = vmul.f32 %v1000, %v1049
    %v1066 = vmul.f32 %v1002, %v1050
    %v1067 = vpack.c.bf16 %v1052, %v1051
    %v1068 = vpack.c.bf16 %v1054, %v1053
    %v1069 = vpack.c.bf16 %v1056, %v1055
    %v1070 = vpack.c.bf16 %v1058, %v1057
    %v1071 = vpack.c.bf16 %v1060, %v1059
    %v1072 = vpack.c.bf16 %v1062, %v1061
    %v1073 = vpack.c.bf16 %v1064, %v1063
    %v1074 = vpack.c.bf16 %v1066, %v1065
    %1075 = vrot.lane.b32.xlu0 %v271, 56
    %v1076 = vpop.permute.xlu0 %1075
    %1077 = vrot.lane.b32.xlu0 %v272, 56
    %v1078 = vpop.permute.xlu0 %1077
    %1079 = vrot.lane.b32.xlu0 %v273, 56
    %v1080 = vpop.permute.xlu0 %1079
    %1081 = vrot.lane.b32.xlu0 %v274, 56
    %v1082 = vpop.permute.xlu0 %1081
    %1083 = vrot.lane.b32.xlu0 %v275, 56
    %v1084 = vpop.permute.xlu0 %1083
    %1085 = vrot.lane.b32.xlu0 %v276, 56
    %v1086 = vpop.permute.xlu0 %1085
    %1087 = vrot.lane.b32.xlu0 %v277, 56
    %v1088 = vpop.permute.xlu0 %1087
    %1089 = vrot.lane.b32.xlu0 %v278, 56
    %v1090 = vpop.permute.xlu0 %1089
    %1099 = vmatprep.subr.bf16.mxu0 0
    %1100 = vmatpush1.bf16.msra.mxu0 %v1076
    %1101 = vmatprep.subr.bf16.mxu0 0
    %1102 = vmatpush1.bf16.msra.mxu0 %v1078
    %1103 = vmatprep.subr.bf16.mxu0 0
    %1104 = vmatpush1.bf16.msra.mxu0 %v1080
    %1105 = vmatprep.subr.bf16.mxu0 0
    %1106 = vmatpush1.bf16.msra.mxu0 %v1082
    %1107 = vmatprep.subr.bf16.mxu0 0
    %1108 = vmatpush1.bf16.msra.mxu0 %v1084
    %1109 = vmatprep.subr.bf16.mxu0 0
    %1110 = vmatpush1.bf16.msra.mxu0 %v1086
    %1111 = vmatprep.subr.bf16.mxu0 0
    %1112 = vmatpush1.bf16.msra.mxu0 %v1088
    %1113 = vmatprep.subr.bf16.mxu0 0
    %1114 = vmatpush1.bf16.msra.mxu0 %v1090
    %1115 = vmatprep.subr.bf16.mxu0 0
    %1116 = vmatpush1.bf16.msra.mxu0 0
    %1117 = vmatprep.subr.bf16.mxu0 0
    %1118 = vmatpush1.bf16.msra.mxu0 0
    %1119 = vmatprep.subr.bf16.mxu0 0
    %1120 = vmatpush1.bf16.msra.mxu0 0
    %1121 = vmatprep.subr.bf16.mxu0 0
    %1122 = vmatpush1.bf16.msra.mxu0 0
    %1123 = vmatprep.subr.bf16.mxu0 0
    %1124 = vmatpush1.bf16.msra.mxu0 0
    %1125 = vmatprep.subr.bf16.mxu0 0
    %1126 = vmatpush1.bf16.msra.mxu0 0
    %1127 = vmatprep.subr.bf16.mxu0 0
    %1128 = vmatpush1.bf16.msra.mxu0 0
    %1129 = vmatprep.subr.bf16.mxu0 0
    %1130 = vmatpush1.bf16.msra.mxu0 0
    %1131 = vmatprep.mubr.bf16.mxu0 0
    %1132 = vmatmul.mubr.bf16.gmra.mrb[0].mxu0 %v1067
    %v1133 = vpop.f32.mrb[0].mxu0
    %v1134 = vadd.f32 0.0, %v1133
    %v1135 = vpop.f32.mrb[0].mxu0
    %v1136 = vpop.f32.mrb[0].mxu0
    %v1137 = vadd.f32 0.0, %v1136
    %v1138 = vpop.f32.mrb[0].mxu0
    %1139 = vmatprep.mubr.bf16.mxu0 0
    %1140 = vmatmul.mubr.bf16.gmra.mrb[0].mxu0 %v1068
    %v1141 = vpop.f32.mrb[0].mxu0
    %v1142 = vadd.f32 0.0, %v1141
    %v1143 = vpop.f32.mrb[0].mxu0
    %v1144 = vpop.f32.mrb[0].mxu0
    %v1145 = vadd.f32 0.0, %v1144
    %v1146 = vpop.f32.mrb[0].mxu0
    %1147 = vmatprep.mubr.bf16.mxu0 0
    %1148 = vmatmul.mubr.bf16.gmra.mrb[0].mxu0 %v1069
    %v1149 = vpop.f32.mrb[0].mxu0
    %v1150 = vadd.f32 0.0, %v1149
    %v1151 = vpop.f32.mrb[0].mxu0
    %v1152 = vpop.f32.mrb[0].mxu0
    %v1153 = vadd.f32 0.0, %v1152
    %v1154 = vpop.f32.mrb[0].mxu0
    %1155 = vmatprep.mubr.bf16.mxu0 0
    %1156 = vmatmul.mubr.bf16.gmra.mrb[0].mxu0 %v1070
    %v1157 = vpop.f32.mrb[0].mxu0
    %v1158 = vadd.f32 0.0, %v1157
    %v1159 = vpop.f32.mrb[0].mxu0
    %v1160 = vpop.f32.mrb[0].mxu0
    %v1161 = vadd.f32 0.0, %v1160
    %v1162 = vpop.f32.mrb[0].mxu0
    %1163 = vmatprep.mubr.bf16.mxu0 0
    %1164 = vmatmul.mubr.bf16.gmra.mrb[0].mxu0 %v1071
    %v1165 = vpop.f32.mrb[0].mxu0
    %v1166 = vadd.f32 0.0, %v1165
    %v1167 = vpop.f32.mrb[0].mxu0
    %v1168 = vpop.f32.mrb[0].mxu0
    %v1169 = vadd.f32 0.0, %v1168
    %v1170 = vpop.f32.mrb[0].mxu0
    %1171 = vmatprep.mubr.bf16.mxu0 0
    %1172 = vmatmul.mubr.bf16.gmra.mrb[0].mxu0 %v1072
    %v1173 = vpop.f32.mrb[0].mxu0
    %v1174 = vadd.f32 0.0, %v1173
    %v1175 = vpop.f32.mrb[0].mxu0
    %v1176 = vpop.f32.mrb[0].mxu0
    %v1177 = vadd.f32 0.0, %v1176
    %v1178 = vpop.f32.mrb[0].mxu0
    %1179 = vmatprep.mubr.bf16.mxu0 0
    %1180 = vmatmul.mubr.bf16.gmra.mrb[0].mxu0 %v1073
    %v1181 = vpop.f32.mrb[0].mxu0
    %v1182 = vadd.f32 0.0, %v1181
    %v1183 = vpop.f32.mrb[0].mxu0
    %v1184 = vpop.f32.mrb[0].mxu0
    %v1185 = vadd.f32 0.0, %v1184
    %v1186 = vpop.f32.mrb[0].mxu0
    %1187 = vmatprep.mubr.bf16.mxu0 0
    %1188 = vmatmul.mubr.bf16.gmra.mrb[0].mxu0 %v1074
    %v1189 = vpop.f32.mrb[0].mxu0
    %v1190 = vadd.f32 0.0, %v1189
    %v1191 = vpop.f32.mrb[0].mxu0
    %v1192 = vpop.f32.mrb[0].mxu0
    %v1193 = vadd.f32 0.0, %v1192
    %v1194 = vpop.f32.mrb[0].mxu0
    %1195 = vdwg.mxu0
    %v1196 = vpack.c.bf16 %v1137, %v1134
    %v1197 = vpack.c.bf16 %v1145, %v1142
    %v1198 = vpack.c.bf16 %v1153, %v1150
    %v1199 = vpack.c.bf16 %v1161, %v1158
    %v1200 = vpack.c.bf16 %v1169, %v1166
    %v1201 = vpack.c.bf16 %v1177, %v1174
    %v1202 = vpack.c.bf16 %v1185, %v1182
    %v1203 = vpack.c.bf16 %v1193, %v1190
    %1204 = vrot.lane.b32.xlu0 %v271, 112
    %v1205 = vpop.permute.xlu0 %1204
    %1206 = vrot.lane.b32.xlu0 %v272, 112
    %v1207 = vpop.permute.xlu0 %1206
    %1208 = vrot.lane.b32.xlu0 %v273, 112
    %v1209 = vpop.permute.xlu0 %1208
    %1210 = vrot.lane.b32.xlu0 %v274, 112
    %v1211 = vpop.permute.xlu0 %1210
    %1212 = vrot.lane.b32.xlu0 %v275, 112
    %v1213 = vpop.permute.xlu0 %1212
    %1214 = vrot.lane.b32.xlu0 %v276, 112
    %v1215 = vpop.permute.xlu0 %1214
    %1216 = vrot.lane.b32.xlu0 %v277, 112
    %v1217 = vpop.permute.xlu0 %1216
    %1218 = vrot.lane.b32.xlu0 %v278, 112
    %v1219 = vpop.permute.xlu0 %1218
    %1220 = vrot.lane.b32.xlu0 %v271, 80
    %v1221 = vpop.permute.xlu0 %1220
    %1222 = vrot.lane.b32.xlu0 %v272, 80
    %v1223 = vpop.permute.xlu0 %1222
    %1224 = vrot.lane.b32.xlu0 %v273, 80
    %v1225 = vpop.permute.xlu0 %1224
    %1226 = vrot.lane.b32.xlu0 %v274, 80
    %v1227 = vpop.permute.xlu0 %1226
    %1228 = vrot.lane.b32.xlu0 %v275, 80
    %v1229 = vpop.permute.xlu0 %1228
    %1230 = vrot.lane.b32.xlu0 %v276, 80
    %v1231 = vpop.permute.xlu0 %1230
    %1232 = vrot.lane.b32.xlu0 %v277, 80
    %v1233 = vpop.permute.xlu0 %1232
    %1234 = vrot.lane.b32.xlu0 %v278, 80
    %v1235 = vpop.permute.xlu0 %1234
    %v1237 = vsel %vm319, %v1205, 0
    %v1240 = vsel %vm319, %v1207, 0
    %v1243 = vsel %vm319, %v1209, 0
    %v1246 = vsel %vm319, %v1211, 0
    %v1249 = vsel %vm319, %v1213, 0
    %v1252 = vsel %vm319, %v1215, 0
    %v1255 = vsel %vm319, %v1217, 0
    %v1258 = vsel %vm319, %v1219, 0
    %v1261 = vsel %vm319, %v1221, 0
    %v1264 = vsel %vm319, %v1223, 0
    %v1267 = vsel %vm319, %v1225, 0
    %v1270 = vsel %vm319, %v1227, 0
    %v1273 = vsel %vm319, %v1229, 0
    %v1276 = vsel %vm319, %v1231, 0
    %v1279 = vsel %vm319, %v1233, 0
    %v1282 = vsel %vm319, %v1235, 0
    %1284 = vmatprep.subr.bf16.mxu0 0
    %1285 = vmatpush1.bf16.xpose.msra.mxu0 %v1261
    %1286 = vmatprep.subr.bf16.mxu0 0
    %1287 = vmatpush1.bf16.xpose.msra.mxu0 %v1264
    %1288 = vmatprep.subr.bf16.mxu0 0
    %1289 = vmatpush1.bf16.xpose.msra.mxu0 %v1267
    %1290 = vmatprep.subr.bf16.mxu0 0
    %1291 = vmatpush1.bf16.xpose.msra.mxu0 %v1270
    %1292 = vmatprep.subr.bf16.mxu0 0
    %1293 = vmatpush1.bf16.xpose.msra.mxu0 %v1273
    %1294 = vmatprep.subr.bf16.mxu0 0
    %1295 = vmatpush1.bf16.xpose.msra.mxu0 %v1276
    %1296 = vmatprep.subr.bf16.mxu0 0
    %1297 = vmatpush1.bf16.xpose.msra.mxu0 %v1279
    %1298 = vmatprep.subr.bf16.mxu0 0
    %1299 = vmatpush1.bf16.xpose.msra.mxu0 %v1282
    %1300 = vmatprep.subr.bf16.mxu0 0
    %1301 = vmatpush1.bf16.xpose.msra.mxu0 0
    %1302 = vmatprep.subr.bf16.mxu0 0
    %1303 = vmatpush1.bf16.xpose.msra.mxu0 0
    %1304 = vmatprep.subr.bf16.mxu0 0
    %1305 = vmatpush1.bf16.xpose.msra.mxu0 0
    %1306 = vmatprep.subr.bf16.mxu0 0
    %1307 = vmatpush1.bf16.xpose.msra.mxu0 0
    %1308 = vmatprep.subr.bf16.mxu0 0
    %1309 = vmatpush1.bf16.xpose.msra.mxu0 0
    %1310 = vmatprep.subr.bf16.mxu0 0
    %1311 = vmatpush1.bf16.xpose.msra.mxu0 0
    %1312 = vmatprep.subr.bf16.mxu0 0
    %1313 = vmatpush1.bf16.xpose.msra.mxu0 0
    %1314 = vmatprep.subr.bf16.mxu0 0
    %1315 = vmatpush1.bf16.xpose.msra.mxu0 0
    %1316 = vmatprep.mubr.bf16.mxu0 0
    %1317 = vmatmul.mubr.bf16.gmra.mrb[0].mxu0 %v1237
    %v1318 = vpop.f32.mrb[0].mxu0
    %v1319 = vadd.f32 %v279, %v1318
    %v1320 = vpop.f32.mrb[0].mxu0
    %v1321 = vpop.f32.mrb[0].mxu0
    %v1322 = vadd.f32 %v280, %v1321
    %v1323 = vpop.f32.mrb[0].mxu0
    %1324 = vmatprep.mubr.bf16.mxu0 0
    %1325 = vmatmul.mubr.bf16.gmra.mrb[0].mxu0 %v1240
    %v1326 = vpop.f32.mrb[0].mxu0
    %v1327 = vadd.f32 %v281, %v1326
    %v1328 = vpop.f32.mrb[0].mxu0
    %v1329 = vpop.f32.mrb[0].mxu0
    %v1330 = vadd.f32 %v282, %v1329
    %v1331 = vpop.f32.mrb[0].mxu0
    %1332 = vmatprep.mubr.bf16.mxu0 0
    %1333 = vmatmul.mubr.bf16.gmra.mrb[0].mxu0 %v1243
    %v1334 = vpop.f32.mrb[0].mxu0
    %v1335 = vadd.f32 %v283, %v1334
    %v1336 = vpop.f32.mrb[0].mxu0
    %v1337 = vpop.f32.mrb[0].mxu0
    %v1338 = vadd.f32 %v284, %v1337
    %v1339 = vpop.f32.mrb[0].mxu0
    %1340 = vmatprep.mubr.bf16.mxu0 0
    %1341 = vmatmul.mubr.bf16.gmra.mrb[0].mxu0 %v1246
    %v1342 = vpop.f32.mrb[0].mxu0
    %v1343 = vadd.f32 %v285, %v1342
    %v1344 = vpop.f32.mrb[0].mxu0
    %v1345 = vpop.f32.mrb[0].mxu0
    %v1346 = vadd.f32 %v286, %v1345
    %v1347 = vpop.f32.mrb[0].mxu0
    %1348 = vmatprep.mubr.bf16.mxu0 0
    %1349 = vmatmul.mubr.bf16.gmra.mrb[0].mxu0 %v1249
    %v1350 = vpop.f32.mrb[0].mxu0
    %v1351 = vadd.f32 %v287, %v1350
    %v1352 = vpop.f32.mrb[0].mxu0
    %v1353 = vpop.f32.mrb[0].mxu0
    %v1354 = vadd.f32 %v288, %v1353
    %v1355 = vpop.f32.mrb[0].mxu0
    %1356 = vmatprep.mubr.bf16.mxu0 0
    %1357 = vmatmul.mubr.bf16.gmra.mrb[0].mxu0 %v1252
    %v1358 = vpop.f32.mrb[0].mxu0
    %v1359 = vadd.f32 %v289, %v1358
    %v1360 = vpop.f32.mrb[0].mxu0
    %v1361 = vpop.f32.mrb[0].mxu0
    %v1362 = vadd.f32 %v290, %v1361
    %v1363 = vpop.f32.mrb[0].mxu0
    %1364 = vmatprep.mubr.bf16.mxu0 0
    %1365 = vmatmul.mubr.bf16.gmra.mrb[0].mxu0 %v1255
    %v1366 = vpop.f32.mrb[0].mxu0
    %v1367 = vadd.f32 %v291, %v1366
    %v1368 = vpop.f32.mrb[0].mxu0
    %v1369 = vpop.f32.mrb[0].mxu0
    %v1370 = vadd.f32 %v292, %v1369
    %v1371 = vpop.f32.mrb[0].mxu0
    %1372 = vmatprep.mubr.bf16.mxu0 0
    %1373 = vmatmul.mubr.bf16.gmra.mrb[0].mxu0 %v1258
    %v1374 = vpop.f32.mrb[0].mxu0
    %v1375 = vadd.f32 %v293, %v1374
    %v1376 = vpop.f32.mrb[0].mxu0
    %v1377 = vpop.f32.mrb[0].mxu0
    %v1378 = vadd.f32 %v294, %v1377
    %v1379 = vpop.f32.mrb[0].mxu0
    %1380 = vdwg.mxu0
    %1381 = vmax.xlane.f32.xlu0 %v1319
    %v1382 = vpop.xlane.xlu0 %1381
    %1383 = vmax.xlane.f32.xlu0 %v1322
    %v1384 = vpop.xlane.xlu0 %1383
    %1385 = vmax.xlane.f32.xlu0 %v1327
    %v1386 = vpop.xlane.xlu0 %1385
    %1387 = vmax.xlane.f32.xlu0 %v1330
    %v1388 = vpop.xlane.xlu0 %1387
    %1389 = vmax.xlane.f32.xlu0 %v1335
    %v1390 = vpop.xlane.xlu0 %1389
    %1391 = vmax.xlane.f32.xlu0 %v1338
    %v1392 = vpop.xlane.xlu0 %1391
    %1393 = vmax.xlane.f32.xlu0 %v1343
    %v1394 = vpop.xlane.xlu0 %1393
    %1395 = vmax.xlane.f32.xlu0 %v1346
    %v1396 = vpop.xlane.xlu0 %1395
    %1397 = vmax.xlane.f32.xlu0 %v1351
    %v1398 = vpop.xlane.xlu0 %1397
    %1399 = vmax.xlane.f32.xlu0 %v1354
    %v1400 = vpop.xlane.xlu0 %1399
    %1401 = vmax.xlane.f32.xlu0 %v1359
    %v1402 = vpop.xlane.xlu0 %1401
    %1403 = vmax.xlane.f32.xlu0 %v1362
    %v1404 = vpop.xlane.xlu0 %1403
    %1405 = vmax.xlane.f32.xlu0 %v1367
    %v1406 = vpop.xlane.xlu0 %1405
    %1407 = vmax.xlane.f32.xlu0 %v1370
    %v1408 = vpop.xlane.xlu0 %1407
    %1409 = vmax.xlane.f32.xlu0 %v1375
    %v1410 = vpop.xlane.xlu0 %1409
    %1411 = vmax.xlane.f32.xlu0 %v1378
    %v1412 = vpop.xlane.xlu0 %1411
    %v1413 = vsub.f32 %v1319, %v1382
    %v1414 = vsub.f32 %v1322, %v1384
    %v1415 = vsub.f32 %v1327, %v1386
    %v1416 = vsub.f32 %v1330, %v1388
    %v1417 = vsub.f32 %v1335, %v1390
    %v1418 = vsub.f32 %v1338, %v1392
    %v1419 = vsub.f32 %v1343, %v1394
    %v1420 = vsub.f32 %v1346, %v1396
    %v1421 = vsub.f32 %v1351, %v1398
    %v1422 = vsub.f32 %v1354, %v1400
    %v1423 = vsub.f32 %v1359, %v1402
    %v1424 = vsub.f32 %v1362, %v1404
    %v1425 = vsub.f32 %v1367, %v1406
    %v1426 = vsub.f32 %v1370, %v1408
    %v1427 = vsub.f32 %v1375, %v1410
    %v1428 = vsub.f32 %v1378, %v1412
    %v1429 = vmul.f32 %v1413, 1.442695
    %v1430 = vpow.pop %v1429
    %v1431 = vmul.f32 %v1414, 1.442695
    %v1432 = vpow.pop %v1431
    %v1433 = vmul.f32 %v1415, 1.442695
    %v1434 = vpow.pop %v1433
    %v1435 = vmul.f32 %v1416, 1.442695
    %v1436 = vpow.pop %v1435
    %v1437 = vmul.f32 %v1417, 1.442695
    %v1438 = vpow.pop %v1437
    %v1439 = vmul.f32 %v1418, 1.442695
    %v1440 = vpow.pop %v1439
    %v1441 = vmul.f32 %v1419, 1.442695
    %v1442 = vpow.pop %v1441
    %v1443 = vmul.f32 %v1420, 1.442695
    %v1444 = vpow.pop %v1443
    %v1445 = vmul.f32 %v1421, 1.442695
    %v1446 = vpow.pop %v1445
    %v1447 = vmul.f32 %v1422, 1.442695
    %v1448 = vpow.pop %v1447
    %v1449 = vmul.f32 %v1423, 1.442695
    %v1450 = vpow.pop %v1449
    %v1451 = vmul.f32 %v1424, 1.442695
    %v1452 = vpow.pop %v1451
    %v1453 = vmul.f32 %v1425, 1.442695
    %v1454 = vpow.pop %v1453
    %v1455 = vmul.f32 %v1426, 1.442695
    %v1456 = vpow.pop %v1455
    %v1457 = vmul.f32 %v1427, 1.442695
    %v1458 = vpow.pop %v1457
    %v1459 = vmul.f32 %v1428, 1.442695
    %v1460 = vpow.pop %v1459
    %1461 = vadd.xlane.f32.xlu0 %v1430
    %v1462 = vpop.xlane.xlu0 %1461
    %1463 = vadd.xlane.f32.xlu0 %v1432
    %v1464 = vpop.xlane.xlu0 %1463
    %1465 = vadd.xlane.f32.xlu0 %v1434
    %v1466 = vpop.xlane.xlu0 %1465
    %1467 = vadd.xlane.f32.xlu0 %v1436
    %v1468 = vpop.xlane.xlu0 %1467
    %1469 = vadd.xlane.f32.xlu0 %v1438
    %v1470 = vpop.xlane.xlu0 %1469
    %1471 = vadd.xlane.f32.xlu0 %v1440
    %v1472 = vpop.xlane.xlu0 %1471
    %1473 = vadd.xlane.f32.xlu0 %v1442
    %v1474 = vpop.xlane.xlu0 %1473
    %1475 = vadd.xlane.f32.xlu0 %v1444
    %v1476 = vpop.xlane.xlu0 %1475
    %1477 = vadd.xlane.f32.xlu0 %v1446
    %v1478 = vpop.xlane.xlu0 %1477
    %1479 = vadd.xlane.f32.xlu0 %v1448
    %v1480 = vpop.xlane.xlu0 %1479
    %1481 = vadd.xlane.f32.xlu0 %v1450
    %v1482 = vpop.xlane.xlu0 %1481
    %1483 = vadd.xlane.f32.xlu0 %v1452
    %v1484 = vpop.xlane.xlu0 %1483
    %1485 = vadd.xlane.f32.xlu0 %v1454
    %v1486 = vpop.xlane.xlu0 %1485
    %1487 = vadd.xlane.f32.xlu0 %v1456
    %v1488 = vpop.xlane.xlu0 %1487
    %1489 = vadd.xlane.f32.xlu0 %v1458
    %v1490 = vpop.xlane.xlu0 %1489
    %1491 = vadd.xlane.f32.xlu0 %v1460
    %v1492 = vpop.xlane.xlu0 %1491
    %v1493 = vrcp.pop %v1462
    %v1494 = vrcp.pop %v1464
    %v1495 = vrcp.pop %v1466
    %v1496 = vrcp.pop %v1468
    %v1497 = vrcp.pop %v1470
    %v1498 = vrcp.pop %v1472
    %v1499 = vrcp.pop %v1474
    %v1500 = vrcp.pop %v1476
    %v1501 = vrcp.pop %v1478
    %v1502 = vrcp.pop %v1480
    %v1503 = vrcp.pop %v1482
    %v1504 = vrcp.pop %v1484
    %v1505 = vrcp.pop %v1486
    %v1506 = vrcp.pop %v1488
    %v1507 = vrcp.pop %v1490
    %v1508 = vrcp.pop %v1492
    %v1509 = vmul.f32 %v1430, %v1493
    %v1510 = vmul.f32 %v1432, %v1494
    %v1511 = vmul.f32 %v1434, %v1495
    %v1512 = vmul.f32 %v1436, %v1496
    %v1513 = vmul.f32 %v1438, %v1497
    %v1514 = vmul.f32 %v1440, %v1498
    %v1515 = vmul.f32 %v1442, %v1499
    %v1516 = vmul.f32 %v1444, %v1500
    %v1517 = vmul.f32 %v1446, %v1501
    %v1518 = vmul.f32 %v1448, %v1502
    %v1519 = vmul.f32 %v1450, %v1503
    %v1520 = vmul.f32 %v1452, %v1504
    %v1521 = vmul.f32 %v1454, %v1505
    %v1522 = vmul.f32 %v1456, %v1506
    %v1523 = vmul.f32 %v1458, %v1507
    %v1524 = vmul.f32 %v1460, %v1508
    %v1525 = vpack.c.bf16 %v1510, %v1509
    %v1526 = vpack.c.bf16 %v1512, %v1511
    %v1527 = vpack.c.bf16 %v1514, %v1513
    %v1528 = vpack.c.bf16 %v1516, %v1515
    %v1529 = vpack.c.bf16 %v1518, %v1517
    %v1530 = vpack.c.bf16 %v1520, %v1519
    %v1531 = vpack.c.bf16 %v1522, %v1521
    %v1532 = vpack.c.bf16 %v1524, %v1523
    %1533 = vrot.lane.b32.xlu0 %v271, 48
    %v1534 = vpop.permute.xlu0 %1533
    %1535 = vrot.lane.b32.xlu0 %v272, 48
    %v1536 = vpop.permute.xlu0 %1535
    %1537 = vrot.lane.b32.xlu0 %v273, 48
    %v1538 = vpop.permute.xlu0 %1537
    %1539 = vrot.lane.b32.xlu0 %v274, 48
    %v1540 = vpop.permute.xlu0 %1539
    %1541 = vrot.lane.b32.xlu0 %v275, 48
    %v1542 = vpop.permute.xlu0 %1541
    %1543 = vrot.lane.b32.xlu0 %v276, 48
    %v1544 = vpop.permute.xlu0 %1543
    %1545 = vrot.lane.b32.xlu0 %v277, 48
    %v1546 = vpop.permute.xlu0 %1545
    %1547 = vrot.lane.b32.xlu0 %v278, 48
    %v1548 = vpop.permute.xlu0 %1547
    %1557 = vmatprep.subr.bf16.mxu0 0
    %1558 = vmatpush1.bf16.msra.mxu0 %v1534
    %1559 = vmatprep.subr.bf16.mxu0 0
    %1560 = vmatpush1.bf16.msra.mxu0 %v1536
    %1561 = vmatprep.subr.bf16.mxu0 0
    %1562 = vmatpush1.bf16.msra.mxu0 %v1538
    %1563 = vmatprep.subr.bf16.mxu0 0
    %1564 = vmatpush1.bf16.msra.mxu0 %v1540
    %1565 = vmatprep.subr.bf16.mxu0 0
    %1566 = vmatpush1.bf16.msra.mxu0 %v1542
    %1567 = vmatprep.subr.bf16.mxu0 0
    %1568 = vmatpush1.bf16.msra.mxu0 %v1544
    %1569 = vmatprep.subr.bf16.mxu0 0
    %1570 = vmatpush1.bf16.msra.mxu0 %v1546
    %1571 = vmatprep.subr.bf16.mxu0 0
    %1572 = vmatpush1.bf16.msra.mxu0 %v1548
    %1573 = vmatprep.subr.bf16.mxu0 0
    %1574 = vmatpush1.bf16.msra.mxu0 0
    %1575 = vmatprep.subr.bf16.mxu0 0
    %1576 = vmatpush1.bf16.msra.mxu0 0
    %1577 = vmatprep.subr.bf16.mxu0 0
    %1578 = vmatpush1.bf16.msra.mxu0 0
    %1579 = vmatprep.subr.bf16.mxu0 0
    %1580 = vmatpush1.bf16.msra.mxu0 0
    %1581 = vmatprep.subr.bf16.mxu0 0
    %1582 = vmatpush1.bf16.msra.mxu0 0
    %1583 = vmatprep.subr.bf16.mxu0 0
    %1584 = vmatpush1.bf16.msra.mxu0 0
    %1585 = vmatprep.subr.bf16.mxu0 0
    %1586 = vmatpush1.bf16.msra.mxu0 0
    %1587 = vmatprep.subr.bf16.mxu0 0
    %1588 = vmatpush1.bf16.msra.mxu0 0
    %1589 = vmatprep.mubr.bf16.mxu0 0
    %1590 = vmatmul.mubr.bf16.gmra.mrb[0].mxu0 %v1525
    %v1591 = vpop.f32.mrb[0].mxu0
    %v1592 = vadd.f32 0.0, %v1591
    %v1593 = vpop.f32.mrb[0].mxu0
    %v1594 = vpop.f32.mrb[0].mxu0
    %v1595 = vadd.f32 0.0, %v1594
    %v1596 = vpop.f32.mrb[0].mxu0
    %1597 = vmatprep.mubr.bf16.mxu0 0
    %1598 = vmatmul.mubr.bf16.gmra.mrb[0].mxu0 %v1526
    %v1599 = vpop.f32.mrb[0].mxu0
    %v1600 = vadd.f32 0.0, %v1599
    %v1601 = vpop.f32.mrb[0].mxu0
    %v1602 = vpop.f32.mrb[0].mxu0
    %v1603 = vadd.f32 0.0, %v1602
    %v1604 = vpop.f32.mrb[0].mxu0
    %1605 = vmatprep.mubr.bf16.mxu0 0
    %1606 = vmatmul.mubr.bf16.gmra.mrb[0].mxu0 %v1527
    %v1607 = vpop.f32.mrb[0].mxu0
    %v1608 = vadd.f32 0.0, %v1607
    %v1609 = vpop.f32.mrb[0].mxu0
    %v1610 = vpop.f32.mrb[0].mxu0
    %v1611 = vadd.f32 0.0, %v1610
    %v1612 = vpop.f32.mrb[0].mxu0
    %1613 = vmatprep.mubr.bf16.mxu0 0
    %1614 = vmatmul.mubr.bf16.gmra.mrb[0].mxu0 %v1528
    %v1615 = vpop.f32.mrb[0].mxu0
    %v1616 = vadd.f32 0.0, %v1615
    %v1617 = vpop.f32.mrb[0].mxu0
    %v1618 = vpop.f32.mrb[0].mxu0
    %v1619 = vadd.f32 0.0, %v1618
    %v1620 = vpop.f32.mrb[0].mxu0
    %1621 = vmatprep.mubr.bf16.mxu0 0
    %1622 = vmatmul.mubr.bf16.gmra.mrb[0].mxu0 %v1529
    %v1623 = vpop.f32.mrb[0].mxu0
    %v1624 = vadd.f32 0.0, %v1623
    %v1625 = vpop.f32.mrb[0].mxu0
    %v1626 = vpop.f32.mrb[0].mxu0
    %v1627 = vadd.f32 0.0, %v1626
    %v1628 = vpop.f32.mrb[0].mxu0
    %1629 = vmatprep.mubr.bf16.mxu0 0
    %1630 = vmatmul.mubr.bf16.gmra.mrb[0].mxu0 %v1530
    %v1631 = vpop.f32.mrb[0].mxu0
    %v1632 = vadd.f32 0.0, %v1631
    %v1633 = vpop.f32.mrb[0].mxu0
    %v1634 = vpop.f32.mrb[0].mxu0
    %v1635 = vadd.f32 0.0, %v1634
    %v1636 = vpop.f32.mrb[0].mxu0
    %1637 = vmatprep.mubr.bf16.mxu0 0
    %1638 = vmatmul.mubr.bf16.gmra.mrb[0].mxu0 %v1531
    %v1639 = vpop.f32.mrb[0].mxu0
    %v1640 = vadd.f32 0.0, %v1639
    %v1641 = vpop.f32.mrb[0].mxu0
    %v1642 = vpop.f32.mrb[0].mxu0
    %v1643 = vadd.f32 0.0, %v1642
    %v1644 = vpop.f32.mrb[0].mxu0
    %1645 = vmatprep.mubr.bf16.mxu0 0
    %1646 = vmatmul.mubr.bf16.gmra.mrb[0].mxu0 %v1532
    %v1647 = vpop.f32.mrb[0].mxu0
    %v1648 = vadd.f32 0.0, %v1647
    %v1649 = vpop.f32.mrb[0].mxu0
    %v1650 = vpop.f32.mrb[0].mxu0
    %v1651 = vadd.f32 0.0, %v1650
    %v1652 = vpop.f32.mrb[0].mxu0
    %1653 = vdwg.mxu0
    %v1654 = vpack.c.bf16 %v1595, %v1592
    %v1655 = vpack.c.bf16 %v1603, %v1600
    %v1656 = vpack.c.bf16 %v1611, %v1608
    %v1657 = vpack.c.bf16 %v1619, %v1616
    %v1658 = vpack.c.bf16 %v1627, %v1624
    %v1659 = vpack.c.bf16 %v1635, %v1632
    %v1660 = vpack.c.bf16 %v1643, %v1640
    %v1661 = vpack.c.bf16 %v1651, %v1648
    %1662 = vrot.lane.b32.xlu0 %v271, 104
    %v1663 = vpop.permute.xlu0 %1662
    %1664 = vrot.lane.b32.xlu0 %v272, 104
    %v1665 = vpop.permute.xlu0 %1664
    %1666 = vrot.lane.b32.xlu0 %v273, 104
    %v1667 = vpop.permute.xlu0 %1666
    %1668 = vrot.lane.b32.xlu0 %v274, 104
    %v1669 = vpop.permute.xlu0 %1668
    %1670 = vrot.lane.b32.xlu0 %v275, 104
    %v1671 = vpop.permute.xlu0 %1670
    %1672 = vrot.lane.b32.xlu0 %v276, 104
    %v1673 = vpop.permute.xlu0 %1672
    %1674 = vrot.lane.b32.xlu0 %v277, 104
    %v1675 = vpop.permute.xlu0 %1674
    %1676 = vrot.lane.b32.xlu0 %v278, 104
    %v1677 = vpop.permute.xlu0 %1676
    %1678 = vrot.lane.b32.xlu0 %v271, 72
    %v1679 = vpop.permute.xlu0 %1678
    %1680 = vrot.lane.b32.xlu0 %v272, 72
    %v1681 = vpop.permute.xlu0 %1680
    %1682 = vrot.lane.b32.xlu0 %v273, 72
    %v1683 = vpop.permute.xlu0 %1682
    %1684 = vrot.lane.b32.xlu0 %v274, 72
    %v1685 = vpop.permute.xlu0 %1684
    %1686 = vrot.lane.b32.xlu0 %v275, 72
    %v1687 = vpop.permute.xlu0 %1686
    %1688 = vrot.lane.b32.xlu0 %v276, 72
    %v1689 = vpop.permute.xlu0 %1688
    %1690 = vrot.lane.b32.xlu0 %v277, 72
    %v1691 = vpop.permute.xlu0 %1690
    %1692 = vrot.lane.b32.xlu0 %v278, 72
    %v1693 = vpop.permute.xlu0 %1692
    %v1695 = vsel %vm319, %v1663, 0
    %v1698 = vsel %vm319, %v1665, 0
    %v1701 = vsel %vm319, %v1667, 0
    %v1704 = vsel %vm319, %v1669, 0
    %v1707 = vsel %vm319, %v1671, 0
    %v1710 = vsel %vm319, %v1673, 0
    %v1713 = vsel %vm319, %v1675, 0
    %v1716 = vsel %vm319, %v1677, 0
    %v1719 = vsel %vm319, %v1679, 0
    %v1722 = vsel %vm319, %v1681, 0
    %v1725 = vsel %vm319, %v1683, 0
    %v1728 = vsel %vm319, %v1685, 0
    %v1731 = vsel %vm319, %v1687, 0
    %v1734 = vsel %vm319, %v1689, 0
    %v1737 = vsel %vm319, %v1691, 0
    %v1740 = vsel %vm319, %v1693, 0
    %1742 = vmatprep.subr.bf16.mxu0 0
    %1743 = vmatpush1.bf16.xpose.msra.mxu0 %v1719
    %1744 = vmatprep.subr.bf16.mxu0 0
    %1745 = vmatpush1.bf16.xpose.msra.mxu0 %v1722
    %1746 = vmatprep.subr.bf16.mxu0 0
    %1747 = vmatpush1.bf16.xpose.msra.mxu0 %v1725
    %1748 = vmatprep.subr.bf16.mxu0 0
    %1749 = vmatpush1.bf16.xpose.msra.mxu0 %v1728
    %1750 = vmatprep.subr.bf16.mxu0 0
    %1751 = vmatpush1.bf16.xpose.msra.mxu0 %v1731
    %1752 = vmatprep.subr.bf16.mxu0 0
    %1753 = vmatpush1.bf16.xpose.msra.mxu0 %v1734
    %1754 = vmatprep.subr.bf16.mxu0 0
    %1755 = vmatpush1.bf16.xpose.msra.mxu0 %v1737
    %1756 = vmatprep.subr.bf16.mxu0 0
    %1757 = vmatpush1.bf16.xpose.msra.mxu0 %v1740
    %1758 = vmatprep.subr.bf16.mxu0 0
    %1759 = vmatpush1.bf16.xpose.msra.mxu0 0
    %1760 = vmatprep.subr.bf16.mxu0 0
    %1761 = vmatpush1.bf16.xpose.msra.mxu0 0
    %1762 = vmatprep.subr.bf16.mxu0 0
    %1763 = vmatpush1.bf16.xpose.msra.mxu0 0
    %1764 = vmatprep.subr.bf16.mxu0 0
    %1765 = vmatpush1.bf16.xpose.msra.mxu0 0
    %1766 = vmatprep.subr.bf16.mxu0 0
    %1767 = vmatpush1.bf16.xpose.msra.mxu0 0
    %1768 = vmatprep.subr.bf16.mxu0 0
    %1769 = vmatpush1.bf16.xpose.msra.mxu0 0
    %1770 = vmatprep.subr.bf16.mxu0 0
    %1771 = vmatpush1.bf16.xpose.msra.mxu0 0
    %1772 = vmatprep.subr.bf16.mxu0 0
    %1773 = vmatpush1.bf16.xpose.msra.mxu0 0
    %1774 = vmatprep.mubr.bf16.mxu0 0
    %1775 = vmatmul.mubr.bf16.gmra.mrb[0].mxu0 %v1695
    %v1776 = vpop.f32.mrb[0].mxu0
    %v1777 = vadd.f32 %v279, %v1776
    %v1778 = vpop.f32.mrb[0].mxu0
    %v1779 = vpop.f32.mrb[0].mxu0
    %v1780 = vadd.f32 %v280, %v1779
    %v1781 = vpop.f32.mrb[0].mxu0
    %1782 = vmatprep.mubr.bf16.mxu0 0
    %1783 = vmatmul.mubr.bf16.gmra.mrb[0].mxu0 %v1698
    %v1784 = vpop.f32.mrb[0].mxu0
    %v1785 = vadd.f32 %v281, %v1784
    %v1786 = vpop.f32.mrb[0].mxu0
    %v1787 = vpop.f32.mrb[0].mxu0
    %v1788 = vadd.f32 %v282, %v1787
    %v1789 = vpop.f32.mrb[0].mxu0
    %1790 = vmatprep.mubr.bf16.mxu0 0
    %1791 = vmatmul.mubr.bf16.gmra.mrb[0].mxu0 %v1701
    %v1792 = vpop.f32.mrb[0].mxu0
    %v1793 = vadd.f32 %v283, %v1792
    %v1794 = vpop.f32.mrb[0].mxu0
    %v1795 = vpop.f32.mrb[0].mxu0
    %v1796 = vadd.f32 %v284, %v1795
    %v1797 = vpop.f32.mrb[0].mxu0
    %1798 = vmatprep.mubr.bf16.mxu0 0
    %1799 = vmatmul.mubr.bf16.gmra.mrb[0].mxu0 %v1704
    %v1800 = vpop.f32.mrb[0].mxu0
    %v1801 = vadd.f32 %v285, %v1800
    %v1802 = vpop.f32.mrb[0].mxu0
    %v1803 = vpop.f32.mrb[0].mxu0
    %v1804 = vadd.f32 %v286, %v1803
    %v1805 = vpop.f32.mrb[0].mxu0
    %1806 = vmatprep.mubr.bf16.mxu0 0
    %1807 = vmatmul.mubr.bf16.gmra.mrb[0].mxu0 %v1707
    %v1808 = vpop.f32.mrb[0].mxu0
    %v1809 = vadd.f32 %v287, %v1808
    %v1810 = vpop.f32.mrb[0].mxu0
    %v1811 = vpop.f32.mrb[0].mxu0
    %v1812 = vadd.f32 %v288, %v1811
    %v1813 = vpop.f32.mrb[0].mxu0
    %1814 = vmatprep.mubr.bf16.mxu0 0
    %1815 = vmatmul.mubr.bf16.gmra.mrb[0].mxu0 %v1710
    %v1816 = vpop.f32.mrb[0].mxu0
    %v1817 = vadd.f32 %v289, %v1816
    %v1818 = vpop.f32.mrb[0].mxu0
    %v1819 = vpop.f32.mrb[0].mxu0
    %v1820 = vadd.f32 %v290, %v1819
    %v1821 = vpop.f32.mrb[0].mxu0
    %1822 = vmatprep.mubr.bf16.mxu0 0
    %1823 = vmatmul.mubr.bf16.gmra.mrb[0].mxu0 %v1713
    %v1824 = vpop.f32.mrb[0].mxu0
    %v1825 = vadd.f32 %v291, %v1824
    %v1826 = vpop.f32.mrb[0].mxu0
    %v1827 = vpop.f32.mrb[0].mxu0
    %v1828 = vadd.f32 %v292, %v1827
    %v1829 = vpop.f32.mrb[0].mxu0
    %1830 = vmatprep.mubr.bf16.mxu0 0
    %1831 = vmatmul.mubr.bf16.gmra.mrb[0].mxu0 %v1716
    %v1832 = vpop.f32.mrb[0].mxu0
    %v1833 = vadd.f32 %v293, %v1832
    %v1834 = vpop.f32.mrb[0].mxu0
    %v1835 = vpop.f32.mrb[0].mxu0
    %v1836 = vadd.f32 %v294, %v1835
    %v1837 = vpop.f32.mrb[0].mxu0
    %1838 = vdwg.mxu0
    %1839 = vmax.xlane.f32.xlu0 %v1777
    %v1840 = vpop.xlane.xlu0 %1839
    %1841 = vmax.xlane.f32.xlu0 %v1780
    %v1842 = vpop.xlane.xlu0 %1841
    %1843 = vmax.xlane.f32.xlu0 %v1785
    %v1844 = vpop.xlane.xlu0 %1843
    %1845 = vmax.xlane.f32.xlu0 %v1788
    %v1846 = vpop.xlane.xlu0 %1845
    %1847 = vmax.xlane.f32.xlu0 %v1793
    %v1848 = vpop.xlane.xlu0 %1847
    %1849 = vmax.xlane.f32.xlu0 %v1796
    %v1850 = vpop.xlane.xlu0 %1849
    %1851 = vmax.xlane.f32.xlu0 %v1801
    %v1852 = vpop.xlane.xlu0 %1851
    %1853 = vmax.xlane.f32.xlu0 %v1804
    %v1854 = vpop.xlane.xlu0 %1853
    %1855 = vmax.xlane.f32.xlu0 %v1809
    %v1856 = vpop.xlane.xlu0 %1855
    %1857 = vmax.xlane.f32.xlu0 %v1812
    %v1858 = vpop.xlane.xlu0 %1857
    %1859 = vmax.xlane.f32.xlu0 %v1817
    %v1860 = vpop.xlane.xlu0 %1859
    %1861 = vmax.xlane.f32.xlu0 %v1820
    %v1862 = vpop.xlane.xlu0 %1861
    %1863 = vmax.xlane.f32.xlu0 %v1825
    %v1864 = vpop.xlane.xlu0 %1863
    %1865 = vmax.xlane.f32.xlu0 %v1828
    %v1866 = vpop.xlane.xlu0 %1865
    %1867 = vmax.xlane.f32.xlu0 %v1833
    %v1868 = vpop.xlane.xlu0 %1867
    %1869 = vmax.xlane.f32.xlu0 %v1836
    %v1870 = vpop.xlane.xlu0 %1869
    %v1871 = vsub.f32 %v1777, %v1840
    %v1872 = vsub.f32 %v1780, %v1842
    %v1873 = vsub.f32 %v1785, %v1844
    %v1874 = vsub.f32 %v1788, %v1846
    %v1875 = vsub.f32 %v1793, %v1848
    %v1876 = vsub.f32 %v1796, %v1850
    %v1877 = vsub.f32 %v1801, %v1852
    %v1878 = vsub.f32 %v1804, %v1854
    %v1879 = vsub.f32 %v1809, %v1856
    %v1880 = vsub.f32 %v1812, %v1858
    %v1881 = vsub.f32 %v1817, %v1860
    %v1882 = vsub.f32 %v1820, %v1862
    %v1883 = vsub.f32 %v1825, %v1864
    %v1884 = vsub.f32 %v1828, %v1866
    %v1885 = vsub.f32 %v1833, %v1868
    %v1886 = vsub.f32 %v1836, %v1870
    %v1887 = vmul.f32 %v1871, 1.442695
    %v1888 = vpow.pop %v1887
    %v1889 = vmul.f32 %v1872, 1.442695
    %v1890 = vpow.pop %v1889
    %v1891 = vmul.f32 %v1873, 1.442695
    %v1892 = vpow.pop %v1891
    %v1893 = vmul.f32 %v1874, 1.442695
    %v1894 = vpow.pop %v1893
    %v1895 = vmul.f32 %v1875, 1.442695
    %v1896 = vpow.pop %v1895
    %v1897 = vmul.f32 %v1876, 1.442695
    %v1898 = vpow.pop %v1897
    %v1899 = vmul.f32 %v1877, 1.442695
    %v1900 = vpow.pop %v1899
    %v1901 = vmul.f32 %v1878, 1.442695
    %v1902 = vpow.pop %v1901
    %v1903 = vmul.f32 %v1879, 1.442695
    %v1904 = vpow.pop %v1903
    %v1905 = vmul.f32 %v1880, 1.442695
    %v1906 = vpow.pop %v1905
    %v1907 = vmul.f32 %v1881, 1.442695
    %v1908 = vpow.pop %v1907
    %v1909 = vmul.f32 %v1882, 1.442695
    %v1910 = vpow.pop %v1909
    %v1911 = vmul.f32 %v1883, 1.442695
    %v1912 = vpow.pop %v1911
    %v1913 = vmul.f32 %v1884, 1.442695
    %v1914 = vpow.pop %v1913
    %v1915 = vmul.f32 %v1885, 1.442695
    %v1916 = vpow.pop %v1915
    %v1917 = vmul.f32 %v1886, 1.442695
    %v1918 = vpow.pop %v1917
    %1919 = vadd.xlane.f32.xlu0 %v1888
    %v1920 = vpop.xlane.xlu0 %1919
    %1921 = vadd.xlane.f32.xlu0 %v1890
    %v1922 = vpop.xlane.xlu0 %1921
    %1923 = vadd.xlane.f32.xlu0 %v1892
    %v1924 = vpop.xlane.xlu0 %1923
    %1925 = vadd.xlane.f32.xlu0 %v1894
    %v1926 = vpop.xlane.xlu0 %1925
    %1927 = vadd.xlane.f32.xlu0 %v1896
    %v1928 = vpop.xlane.xlu0 %1927
    %1929 = vadd.xlane.f32.xlu0 %v1898
    %v1930 = vpop.xlane.xlu0 %1929
    %1931 = vadd.xlane.f32.xlu0 %v1900
    %v1932 = vpop.xlane.xlu0 %1931
    %1933 = vadd.xlane.f32.xlu0 %v1902
    %v1934 = vpop.xlane.xlu0 %1933
    %1935 = vadd.xlane.f32.xlu0 %v1904
    %v1936 = vpop.xlane.xlu0 %1935
    %1937 = vadd.xlane.f32.xlu0 %v1906
    %v1938 = vpop.xlane.xlu0 %1937
    %1939 = vadd.xlane.f32.xlu0 %v1908
    %v1940 = vpop.xlane.xlu0 %1939
    %1941 = vadd.xlane.f32.xlu0 %v1910
    %v1942 = vpop.xlane.xlu0 %1941
    %1943 = vadd.xlane.f32.xlu0 %v1912
    %v1944 = vpop.xlane.xlu0 %1943
    %1945 = vadd.xlane.f32.xlu0 %v1914
    %v1946 = vpop.xlane.xlu0 %1945
    %1947 = vadd.xlane.f32.xlu0 %v1916
    %v1948 = vpop.xlane.xlu0 %1947
    %1949 = vadd.xlane.f32.xlu0 %v1918
    %v1950 = vpop.xlane.xlu0 %1949
    %v1951 = vrcp.pop %v1920
    %v1952 = vrcp.pop %v1922
    %v1953 = vrcp.pop %v1924
    %v1954 = vrcp.pop %v1926
    %v1955 = vrcp.pop %v1928
    %v1956 = vrcp.pop %v1930
    %v1957 = vrcp.pop %v1932
    %v1958 = vrcp.pop %v1934
    %v1959 = vrcp.pop %v1936
    %v1960 = vrcp.pop %v1938
    %v1961 = vrcp.pop %v1940
    %v1962 = vrcp.pop %v1942
    %v1963 = vrcp.pop %v1944
    %v1964 = vrcp.pop %v1946
    %v1965 = vrcp.pop %v1948
    %v1966 = vrcp.pop %v1950
    %v1967 = vmul.f32 %v1888, %v1951
    %v1968 = vmul.f32 %v1890, %v1952
    %v1969 = vmul.f32 %v1892, %v1953
    %v1970 = vmul.f32 %v1894, %v1954
    %v1971 = vmul.f32 %v1896, %v1955
    %v1972 = vmul.f32 %v1898, %v1956
    %v1973 = vmul.f32 %v1900, %v1957
    %v1974 = vmul.f32 %v1902, %v1958
    %v1975 = vmul.f32 %v1904, %v1959
    %v1976 = vmul.f32 %v1906, %v1960
    %v1977 = vmul.f32 %v1908, %v1961
    %v1978 = vmul.f32 %v1910, %v1962
    %v1979 = vmul.f32 %v1912, %v1963
    %v1980 = vmul.f32 %v1914, %v1964
    %v1981 = vmul.f32 %v1916, %v1965
    %v1982 = vmul.f32 %v1918, %v1966
    %v1983 = vpack.c.bf16 %v1968, %v1967
    %v1984 = vpack.c.bf16 %v1970, %v1969
    %v1985 = vpack.c.bf16 %v1972, %v1971
    %v1986 = vpack.c.bf16 %v1974, %v1973
    %v1987 = vpack.c.bf16 %v1976, %v1975
    %v1988 = vpack.c.bf16 %v1978, %v1977
    %v1989 = vpack.c.bf16 %v1980, %v1979
    %v1990 = vpack.c.bf16 %v1982, %v1981
    %1991 = vrot.lane.b32.xlu0 %v271, 40
    %v1992 = vpop.permute.xlu0 %1991
    %1993 = vrot.lane.b32.xlu0 %v272, 40
    %v1994 = vpop.permute.xlu0 %1993
    %1995 = vrot.lane.b32.xlu0 %v273, 40
    %v1996 = vpop.permute.xlu0 %1995
    %1997 = vrot.lane.b32.xlu0 %v274, 40
    %v1998 = vpop.permute.xlu0 %1997
    %1999 = vrot.lane.b32.xlu0 %v275, 40
    %v2000 = vpop.permute.xlu0 %1999
    %2001 = vrot.lane.b32.xlu0 %v276, 40
    %v2002 = vpop.permute.xlu0 %2001
    %2003 = vrot.lane.b32.xlu0 %v277, 40
    %v2004 = vpop.permute.xlu0 %2003
    %2005 = vrot.lane.b32.xlu0 %v278, 40
    %v2006 = vpop.permute.xlu0 %2005
    %2015 = vmatprep.subr.bf16.mxu0 0
    %2016 = vmatpush1.bf16.msra.mxu0 %v1992
    %2017 = vmatprep.subr.bf16.mxu0 0
    %2018 = vmatpush1.bf16.msra.mxu0 %v1994
    %2019 = vmatprep.subr.bf16.mxu0 0
    %2020 = vmatpush1.bf16.msra.mxu0 %v1996
    %2021 = vmatprep.subr.bf16.mxu0 0
    %2022 = vmatpush1.bf16.msra.mxu0 %v1998
    %2023 = vmatprep.subr.bf16.mxu0 0
    %2024 = vmatpush1.bf16.msra.mxu0 %v2000
    %2025 = vmatprep.subr.bf16.mxu0 0
    %2026 = vmatpush1.bf16.msra.mxu0 %v2002
    %2027 = vmatprep.subr.bf16.mxu0 0
    %2028 = vmatpush1.bf16.msra.mxu0 %v2004
    %2029 = vmatprep.subr.bf16.mxu0 0
    %2030 = vmatpush1.bf16.msra.mxu0 %v2006
    %2031 = vmatprep.subr.bf16.mxu0 0
    %2032 = vmatpush1.bf16.msra.mxu0 0
    %2033 = vmatprep.subr.bf16.mxu0 0
    %2034 = vmatpush1.bf16.msra.mxu0 0
    %2035 = vmatprep.subr.bf16.mxu0 0
    %2036 = vmatpush1.bf16.msra.mxu0 0
    %2037 = vmatprep.subr.bf16.mxu0 0
    %2038 = vmatpush1.bf16.msra.mxu0 0
    %2039 = vmatprep.subr.bf16.mxu0 0
    %2040 = vmatpush1.bf16.msra.mxu0 0
    %2041 = vmatprep.subr.bf16.mxu0 0
    %2042 = vmatpush1.bf16.msra.mxu0 0
    %2043 = vmatprep.subr.bf16.mxu0 0
    %2044 = vmatpush1.bf16.msra.mxu0 0
    %2045 = vmatprep.subr.bf16.mxu0 0
    %2046 = vmatpush1.bf16.msra.mxu0 0
    %2047 = vmatprep.mubr.bf16.mxu0 0
    %2048 = vmatmul.mubr.bf16.gmra.mrb[0].mxu0 %v1983
    %v2049 = vpop.f32.mrb[0].mxu0
    %v2050 = vadd.f32 0.0, %v2049
    %v2051 = vpop.f32.mrb[0].mxu0
    %v2052 = vpop.f32.mrb[0].mxu0
    %v2053 = vadd.f32 0.0, %v2052
    %v2054 = vpop.f32.mrb[0].mxu0
    %2055 = vmatprep.mubr.bf16.mxu0 0
    %2056 = vmatmul.mubr.bf16.gmra.mrb[0].mxu0 %v1984
    %v2057 = vpop.f32.mrb[0].mxu0
    %v2058 = vadd.f32 0.0, %v2057
    %v2059 = vpop.f32.mrb[0].mxu0
    %v2060 = vpop.f32.mrb[0].mxu0
    %v2061 = vadd.f32 0.0, %v2060
    %v2062 = vpop.f32.mrb[0].mxu0
    %2063 = vmatprep.mubr.bf16.mxu0 0
    %2064 = vmatmul.mubr.bf16.gmra.mrb[0].mxu0 %v1985
    %v2065 = vpop.f32.mrb[0].mxu0
    %v2066 = vadd.f32 0.0, %v2065
    %v2067 = vpop.f32.mrb[0].mxu0
    %v2068 = vpop.f32.mrb[0].mxu0
    %v2069 = vadd.f32 0.0, %v2068
    %v2070 = vpop.f32.mrb[0].mxu0
    %2071 = vmatprep.mubr.bf16.mxu0 0
    %2072 = vmatmul.mubr.bf16.gmra.mrb[0].mxu0 %v1986
    %v2073 = vpop.f32.mrb[0].mxu0
    %v2074 = vadd.f32 0.0, %v2073
    %v2075 = vpop.f32.mrb[0].mxu0
    %v2076 = vpop.f32.mrb[0].mxu0
    %v2077 = vadd.f32 0.0, %v2076
    %v2078 = vpop.f32.mrb[0].mxu0
    %2079 = vmatprep.mubr.bf16.mxu0 0
    %2080 = vmatmul.mubr.bf16.gmra.mrb[0].mxu0 %v1987
    %v2081 = vpop.f32.mrb[0].mxu0
    %v2082 = vadd.f32 0.0, %v2081
    %v2083 = vpop.f32.mrb[0].mxu0
    %v2084 = vpop.f32.mrb[0].mxu0
    %v2085 = vadd.f32 0.0, %v2084
    %v2086 = vpop.f32.mrb[0].mxu0
    %2087 = vmatprep.mubr.bf16.mxu0 0
    %2088 = vmatmul.mubr.bf16.gmra.mrb[0].mxu0 %v1988
    %v2089 = vpop.f32.mrb[0].mxu0
    %v2090 = vadd.f32 0.0, %v2089
    %v2091 = vpop.f32.mrb[0].mxu0
    %v2092 = vpop.f32.mrb[0].mxu0
    %v2093 = vadd.f32 0.0, %v2092
    %v2094 = vpop.f32.mrb[0].mxu0
    %2095 = vmatprep.mubr.bf16.mxu0 0
    %2096 = vmatmul.mubr.bf16.gmra.mrb[0].mxu0 %v1989
    %v2097 = vpop.f32.mrb[0].mxu0
    %v2098 = vadd.f32 0.0, %v2097
    %v2099 = vpop.f32.mrb[0].mxu0
    %v2100 = vpop.f32.mrb[0].mxu0
    %v2101 = vadd.f32 0.0, %v2100
    %v2102 = vpop.f32.mrb[0].mxu0
    %2103 = vmatprep.mubr.bf16.mxu0 0
    %2104 = vmatmul.mubr.bf16.gmra.mrb[0].mxu0 %v1990
    %v2105 = vpop.f32.mrb[0].mxu0
    %v2106 = vadd.f32 0.0, %v2105
    %v2107 = vpop.f32.mrb[0].mxu0
    %v2108 = vpop.f32.mrb[0].mxu0
    %v2109 = vadd.f32 0.0, %v2108
    %v2110 = vpop.f32.mrb[0].mxu0
    %2111 = vdwg.mxu0
    %v2112 = vpack.c.bf16 %v2053, %v2050
    %v2113 = vpack.c.bf16 %v2061, %v2058
    %v2114 = vpack.c.bf16 %v2069, %v2066
    %v2115 = vpack.c.bf16 %v2077, %v2074
    %v2116 = vpack.c.bf16 %v2085, %v2082
    %v2117 = vpack.c.bf16 %v2093, %v2090
    %v2118 = vpack.c.bf16 %v2101, %v2098
    %v2119 = vpack.c.bf16 %v2109, %v2106
    %2128 = vrot.lane.b32.xlu0 %v1196, 8
    %v2129 = vpop.permute.xlu0 %2128
    %2130 = vrot.lane.b32.xlu0 %v1197, 8
    %v2131 = vpop.permute.xlu0 %2130
    %2132 = vrot.lane.b32.xlu0 %v1198, 8
    %v2133 = vpop.permute.xlu0 %2132
    %2134 = vrot.lane.b32.xlu0 %v1199, 8
    %v2135 = vpop.permute.xlu0 %2134
    %2136 = vrot.lane.b32.xlu0 %v1200, 8
    %v2137 = vpop.permute.xlu0 %2136
    %2138 = vrot.lane.b32.xlu0 %v1201, 8
    %v2139 = vpop.permute.xlu0 %2138
    %2140 = vrot.lane.b32.xlu0 %v1202, 8
    %v2141 = vpop.permute.xlu0 %2140
    %2142 = vrot.lane.b32.xlu0 %v1203, 8
    %v2143 = vpop.permute.xlu0 %2142
    %2152 = vrot.lane.b32.xlu0 %v1654, 16
    %v2153 = vpop.permute.xlu0 %2152
    %2154 = vrot.lane.b32.xlu0 %v1655, 16
    %v2155 = vpop.permute.xlu0 %2154
    %2156 = vrot.lane.b32.xlu0 %v1656, 16
    %v2157 = vpop.permute.xlu0 %2156
    %2158 = vrot.lane.b32.xlu0 %v1657, 16
    %v2159 = vpop.permute.xlu0 %2158
    %2160 = vrot.lane.b32.xlu0 %v1658, 16
    %v2161 = vpop.permute.xlu0 %2160
    %2162 = vrot.lane.b32.xlu0 %v1659, 16
    %v2163 = vpop.permute.xlu0 %2162
    %2164 = vrot.lane.b32.xlu0 %v1660, 16
    %v2165 = vpop.permute.xlu0 %2164
    %2166 = vrot.lane.b32.xlu0 %v1661, 16
    %v2167 = vpop.permute.xlu0 %2166
    %2176 = vrot.lane.b32.xlu0 %v2112, 24
    %v2177 = vpop.permute.xlu0 %2176
    %2178 = vrot.lane.b32.xlu0 %v2113, 24
    %v2179 = vpop.permute.xlu0 %2178
    %2180 = vrot.lane.b32.xlu0 %v2114, 24
    %v2181 = vpop.permute.xlu0 %2180
    %2182 = vrot.lane.b32.xlu0 %v2115, 24
    %v2183 = vpop.permute.xlu0 %2182
    %2184 = vrot.lane.b32.xlu0 %v2116, 24
    %v2185 = vpop.permute.xlu0 %2184
    %2186 = vrot.lane.b32.xlu0 %v2117, 24
    %v2187 = vpop.permute.xlu0 %2186
    %2188 = vrot.lane.b32.xlu0 %v2118, 24
    %v2189 = vpop.permute.xlu0 %2188
    %2190 = vrot.lane.b32.xlu0 %v2119, 24
    %v2191 = vpop.permute.xlu0 %2190
    %v2194 = vsel %vm319, %v738, %v2129
    %v2197 = vsel %vm319, %v739, %v2131
    %v2200 = vsel %vm319, %v740, %v2133
    %v2203 = vsel %vm319, %v741, %v2135
    %v2206 = vsel %vm319, %v742, %v2137
    %v2209 = vsel %vm319, %v743, %v2139
    %v2212 = vsel %vm319, %v744, %v2141
    %v2215 = vsel %vm319, %v745, %v2143
    %vm2216 = vcmask 130048
    %v2218 = vsel %vm2216, %v2194, %v2153
    %v2220 = vsel %vm2216, %v2197, %v2155
    %v2222 = vsel %vm2216, %v2200, %v2157
    %v2224 = vsel %vm2216, %v2203, %v2159
    %v2226 = vsel %vm2216, %v2206, %v2161
    %v2228 = vsel %vm2216, %v2209, %v2163
    %v2230 = vsel %vm2216, %v2212, %v2165
    %v2232 = vsel %vm2216, %v2215, %v2167
    %vm2233 = vcmask 195584
    %v2235 = vsel %vm2233, %v2218, %v2177
    %v2237 = vsel %vm2233, %v2220, %v2179
    %v2239 = vsel %vm2233, %v2222, %v2181
    %v2241 = vsel %vm2233, %v2224, %v2183
    %v2243 = vsel %vm2233, %v2226, %v2185
    %v2245 = vsel %vm2233, %v2228, %v2187
    %v2247 = vsel %vm2233, %v2230, %v2189
    %v2249 = vsel %vm2233, %v2232, %v2191
    %v2250 = vld [vmem:[#allocation7] sm:$0xf]
    %v2251 = vld [vmem:[#allocation7 + $0x4] sm:$0xf]
    %v2252 = vld [vmem:[#allocation7 + $0x8] sm:$0xf]
    %v2253 = vld [vmem:[#allocation7 + $0xc] sm:$0xf]
    %v2254 = vld [vmem:[%s3] sm:$0x1]
    %v2256 = vlaneseq
    %v2257 = vshrl.u32 %v2256, 7
    %v2258 = vsub.s32 0, %v2257
    %v2259 = vrot.slane %v2254, %v2258
    %v2265 = vunpack.c.l.b16 %v2250
    %v2266 = vunpack.c.l.b16 %v2251
    %v2267 = vunpack.c.l.b16 %v2252
    %v2268 = vunpack.c.l.b16 %v2253
    %v2269 = vpack.c.b16 %v2266, %v2265
    %v2270 = vpack.c.b16 %v2268, %v2267
    %v2273 = vsel %vm149, %v2235, 0
    %v2275 = vsel %vm149, %v2237, 0
    %v2277 = vsel %vm149, %v2239, 0
    %v2279 = vsel %vm149, %v2241, 0
    %v2281 = vsel %vm149, %v2243, 0
    %v2283 = vsel %vm149, %v2245, 0
    %v2285 = vsel %vm149, %v2247, 0
    %v2287 = vsel %vm149, %v2249, 0
    %2289 = vmatprep.subr.bf16.mxu0 0
    %2290 = vmatpush1.bf16.msra.mxu0 %v2269
    %2291 = vmatprep.subr.bf16.mxu0 0
    %2292 = vmatpush1.bf16.msra.mxu0 %v2270
    %2293 = vmatprep.subr.bf16.mxu0 0
    %2294 = vmatpush1.bf16.msra.mxu0 0
    %2295 = vmatprep.subr.bf16.mxu0 0
    %2296 = vmatpush1.bf16.msra.mxu0 0
    %2297 = vmatprep.subr.bf16.mxu0 0
    %2298 = vmatpush1.bf16.msra.mxu0 0
    %2299 = vmatprep.subr.bf16.mxu0 0
    %2300 = vmatpush1.bf16.msra.mxu0 0
    %2301 = vmatprep.subr.bf16.mxu0 0
    %2302 = vmatpush1.bf16.msra.mxu0 0
    %2303 = vmatprep.subr.bf16.mxu0 0
    %2304 = vmatpush1.bf16.msra.mxu0 0
    %2305 = vmatprep.subr.bf16.mxu0 0
    %2306 = vmatpush1.bf16.msra.mxu0 0
    %2307 = vmatprep.subr.bf16.mxu0 0
    %2308 = vmatpush1.bf16.msra.mxu0 0
    %2309 = vmatprep.subr.bf16.mxu0 0
    %2310 = vmatpush1.bf16.msra.mxu0 0
    %2311 = vmatprep.subr.bf16.mxu0 0
    %2312 = vmatpush1.bf16.msra.mxu0 0
    %2313 = vmatprep.subr.bf16.mxu0 0
    %2314 = vmatpush1.bf16.msra.mxu0 0
    %2315 = vmatprep.subr.bf16.mxu0 0
    %2316 = vmatpush1.bf16.msra.mxu0 0
    %2317 = vmatprep.subr.bf16.mxu0 0
    %2318 = vmatpush1.bf16.msra.mxu0 0
    %2319 = vmatprep.subr.bf16.mxu0 0
    %2320 = vmatpush1.bf16.msra.mxu0 0
    %2321 = vmatprep.mubr.bf16.mxu0 0
    %2322 = vmatmul.mubr.bf16.gmra.mrb[0].mxu0 %v2273
    %v2323 = vpop.f32.mrb[0].mxu0
    %v2324 = vadd.f32 %v2259, %v2323
    %v2325 = vpop.f32.mrb[0].mxu0
    %v2326 = vpop.f32.mrb[0].mxu0
    %v2327 = vadd.f32 %v2259, %v2326
    %v2328 = vpop.f32.mrb[0].mxu0
    %2329 = vmatprep.mubr.bf16.mxu0 0
    %2330 = vmatmul.mubr.bf16.gmra.mrb[0].mxu0 %v2275
    %v2331 = vpop.f32.mrb[0].mxu0
    %v2332 = vadd.f32 %v2259, %v2331
    %v2333 = vpop.f32.mrb[0].mxu0
    %v2334 = vpop.f32.mrb[0].mxu0
    %v2335 = vadd.f32 %v2259, %v2334
    %v2336 = vpop.f32.mrb[0].mxu0
    %2337 = vmatprep.mubr.bf16.mxu0 0
    %2338 = vmatmul.mubr.bf16.gmra.mrb[0].mxu0 %v2277
    %v2339 = vpop.f32.mrb[0].mxu0
    %v2340 = vadd.f32 %v2259, %v2339
    %v2341 = vpop.f32.mrb[0].mxu0
    %v2342 = vpop.f32.mrb[0].mxu0
    %v2343 = vadd.f32 %v2259, %v2342
    %v2344 = vpop.f32.mrb[0].mxu0
    %2345 = vmatprep.mubr.bf16.mxu0 0
    %2346 = vmatmul.mubr.bf16.gmra.mrb[0].mxu0 %v2279
    %v2347 = vpop.f32.mrb[0].mxu0
    %v2348 = vadd.f32 %v2259, %v2347
    %v2349 = vpop.f32.mrb[0].mxu0
    %v2350 = vpop.f32.mrb[0].mxu0
    %v2351 = vadd.f32 %v2259, %v2350
    %v2352 = vpop.f32.mrb[0].mxu0
    %2353 = vmatprep.mubr.bf16.mxu0 0
    %2354 = vmatmul.mubr.bf16.gmra.mrb[0].mxu0 %v2281
    %v2355 = vpop.f32.mrb[0].mxu0
    %v2356 = vadd.f32 %v2259, %v2355
    %v2357 = vpop.f32.mrb[0].mxu0
    %v2358 = vpop.f32.mrb[0].mxu0
    %v2359 = vadd.f32 %v2259, %v2358
    %v2360 = vpop.f32.mrb[0].mxu0
    %2361 = vmatprep.mubr.bf16.mxu0 0
    %2362 = vmatmul.mubr.bf16.gmra.mrb[0].mxu0 %v2283
    %v2363 = vpop.f32.mrb[0].mxu0
    %v2364 = vadd.f32 %v2259, %v2363
    %v2365 = vpop.f32.mrb[0].mxu0
    %v2366 = vpop.f32.mrb[0].mxu0
    %v2367 = vadd.f32 %v2259, %v2366
    %v2368 = vpop.f32.mrb[0].mxu0
    %2369 = vmatprep.mubr.bf16.mxu0 0
    %2370 = vmatmul.mubr.bf16.gmra.mrb[0].mxu0 %v2285
    %v2371 = vpop.f32.mrb[0].mxu0
    %v2372 = vadd.f32 %v2259, %v2371
    %v2373 = vpop.f32.mrb[0].mxu0
    %v2374 = vpop.f32.mrb[0].mxu0
    %v2375 = vadd.f32 %v2259, %v2374
    %v2376 = vpop.f32.mrb[0].mxu0
    %2377 = vmatprep.mubr.bf16.mxu0 0
    %2378 = vmatmul.mubr.bf16.gmra.mrb[0].mxu0 %v2287
    %v2379 = vpop.f32.mrb[0].mxu0
    %v2380 = vadd.f32 %v2259, %v2379
    %v2381 = vpop.f32.mrb[0].mxu0
    %v2382 = vpop.f32.mrb[0].mxu0
    %v2383 = vadd.f32 %v2259, %v2382
    %v2384 = vpop.f32.mrb[0].mxu0
    %2385 = vdwg.mxu0
    %v2402 = vrot.slane %v2327, 7
    %vm2403 = vcmask 1041409
    %v2404 = vsel %vm2403, %v2402, %v2324
    %v2405 = vrot.slane %v2332, 6
    %vm2406 = vcmask 1042434
    %v2407 = vsel %vm2406, %v2405, %v2404
    %v2408 = vrot.slane %v2335, 5
    %vm2409 = vcmask 1043459
    %v2410 = vsel %vm2409, %v2408, %v2407
    %v2411 = vrot.slane %v2340, 4
    %vm2412 = vcmask 1044484
    %v2413 = vsel %vm2412, %v2411, %v2410
    %v2414 = vrot.slane %v2343, 3
    %vm2415 = vcmask 1045509
    %v2416 = vsel %vm2415, %v2414, %v2413
    %v2417 = vrot.slane %v2348, 2
    %vm2418 = vcmask 1046534
    %v2419 = vsel %vm2418, %v2417, %v2416
    %v2420 = vrot.slane %v2351, 1
    %vm2421 = vcmask 1047559
    %v2422 = vsel %vm2421, %v2420, %v2419
    %v2423 = vrot.slane %v2359, 7
    %v2424 = vsel %vm2403, %v2423, %v2356
    %v2425 = vrot.slane %v2364, 6
    %v2426 = vsel %vm2406, %v2425, %v2424
    %v2427 = vrot.slane %v2367, 5
    %v2428 = vsel %vm2409, %v2427, %v2426
    %v2429 = vrot.slane %v2372, 4
    %v2430 = vsel %vm2412, %v2429, %v2428
    %v2431 = vrot.slane %v2375, 3
    %v2432 = vsel %vm2415, %v2431, %v2430
    %v2433 = vrot.slane %v2380, 2
    %v2434 = vsel %vm2418, %v2433, %v2432
    %v2435 = vrot.slane %v2383, 1
    %v2436 = vsel %vm2421, %v2435, %v2434
    %2439 = vst.msk [vmem:[#allocation10] sm:$0xff] %vm149, %v2422
    %2440 = vst.msk [vmem:[#allocation10 + $0x10] sm:$0xff] %vm149, %v2436
    %v2441 = vrot.slane %v2324, 1
    %v2442 = vsel %vm2403, %v2327, %v2441
    %v2443 = vrot.slane %v2332, 7
    %v2444 = vsel %vm2406, %v2443, %v2442
    %v2445 = vrot.slane %v2335, 6
    %v2446 = vsel %vm2409, %v2445, %v2444
    %v2447 = vrot.slane %v2340, 5
    %v2448 = vsel %vm2412, %v2447, %v2446
    %v2449 = vrot.slane %v2343, 4
    %v2450 = vsel %vm2415, %v2449, %v2448
    %v2451 = vrot.slane %v2348, 3
    %v2452 = vsel %vm2418, %v2451, %v2450
    %v2453 = vrot.slane %v2351, 2
    %v2454 = vsel %vm2421, %v2453, %v2452
    %v2455 = vrot.slane %v2356, 1
    %v2456 = vsel %vm2403, %v2359, %v2455
    %v2457 = vrot.slane %v2364, 7
    %v2458 = vsel %vm2406, %v2457, %v2456
    %v2459 = vrot.slane %v2367, 6
    %v2460 = vsel %vm2409, %v2459, %v2458
    %v2461 = vrot.slane %v2372, 5
    %v2462 = vsel %vm2412, %v2461, %v2460
    %v2463 = vrot.slane %v2375, 4
    %v2464 = vsel %vm2415, %v2463, %v2462
    %v2465 = vrot.slane %v2380, 3
    %v2466 = vsel %vm2418, %v2465, %v2464
    %v2467 = vrot.slane %v2383, 2
    %v2468 = vsel %vm2421, %v2467, %v2466
    %2469 = vrot.lane.b32.xlu0 %v2454, 32
    %v2470 = vpop.permute.xlu0 %2469
    %2471 = vrot.lane.b32.xlu0 %v2468, 32
    %v2472 = vpop.permute.xlu0 %2471
    %vm2475 = vcmask 523520
    %2476 = vst.msk [vmem:[#allocation10] sm:$0xff] %vm2475, %v2470
    %2477 = vst.msk [vmem:[#allocation10 + $0x10] sm:$0xff] %vm2475, %v2472
    %v2478 = vrot.slane %v2324, 2
    %v2479 = vrot.slane %v2327, 1
    %v2480 = vsel %vm2403, %v2479, %v2478
    %v2481 = vsel %vm2406, %v2332, %v2480
    %v2482 = vrot.slane %v2335, 7
    %v2483 = vsel %vm2409, %v2482, %v2481
    %v2484 = vrot.slane %v2340, 6
    %v2485 = vsel %vm2412, %v2484, %v2483
    %v2486 = vrot.slane %v2343, 5
    %v2487 = vsel %vm2415, %v2486, %v2485
    %v2488 = vrot.slane %v2348, 4
    %v2489 = vsel %vm2418, %v2488, %v2487
    %v2490 = vrot.slane %v2351, 3
    %v2491 = vsel %vm2421, %v2490, %v2489
    %v2492 = vrot.slane %v2356, 2
    %v2493 = vrot.slane %v2359, 1
    %v2494 = vsel %vm2403, %v2493, %v2492
    %v2495 = vsel %vm2406, %v2364, %v2494
    %v2496 = vrot.slane %v2367, 7
    %v2497 = vsel %vm2409, %v2496, %v2495
    %v2498 = vrot.slane %v2372, 6
    %v2499 = vsel %vm2412, %v2498, %v2497
    %v2500 = vrot.slane %v2375, 5
    %v2501 = vsel %vm2415, %v2500, %v2499
    %v2502 = vrot.slane %v2380, 4
    %v2503 = vsel %vm2418, %v2502, %v2501
    %v2504 = vrot.slane %v2383, 3
    %v2505 = vsel %vm2421, %v2504, %v2503
    %2506 = vrot.lane.b32.xlu0 %v2491, 64
    %v2507 = vpop.permute.xlu0 %2506
    %2508 = vrot.lane.b32.xlu0 %v2505, 64
    %v2509 = vpop.permute.xlu0 %2508
    %vm2512 = vcmask 785920
    %2513 = vst.msk [vmem:[#allocation10] sm:$0xff] %vm2512, %v2507
    %2514 = vst.msk [vmem:[#allocation10 + $0x10] sm:$0xff] %vm2512, %v2509
    %v2515 = vrot.slane %v2324, 3
    %v2516 = vrot.slane %v2327, 2
    %v2517 = vsel %vm2403, %v2516, %v2515
    %v2518 = vrot.slane %v2332, 1
    %v2519 = vsel %vm2406, %v2518, %v2517
    %v2520 = vsel %vm2409, %v2335, %v2519
    %v2521 = vrot.slane %v2340, 7
    %v2522 = vsel %vm2412, %v2521, %v2520
    %v2523 = vrot.slane %v2343, 6
    %v2524 = vsel %vm2415, %v2523, %v2522
    %v2525 = vrot.slane %v2348, 5
    %v2526 = vsel %vm2418, %v2525, %v2524
    %v2527 = vrot.slane %v2351, 4
    %v2528 = vsel %vm2421, %v2527, %v2526
    %v2529 = vrot.slane %v2356, 3
    %v2530 = vrot.slane %v2359, 2
    %v2531 = vsel %vm2403, %v2530, %v2529
    %v2532 = vrot.slane %v2364, 1
    %v2533 = vsel %vm2406, %v2532, %v2531
    %v2534 = vsel %vm2409, %v2367, %v2533
    %v2535 = vrot.slane %v2372, 7
    %v2536 = vsel %vm2412, %v2535, %v2534
    %v2537 = vrot.slane %v2375, 6
    %v2538 = vsel %vm2415, %v2537, %v2536
    %v2539 = vrot.slane %v2380, 5
    %v2540 = vsel %vm2418, %v2539, %v2538
    %v2541 = vrot.slane %v2383, 4
    %v2542 = vsel %vm2421, %v2541, %v2540
    %2543 = vrot.lane.b32.xlu0 %v2528, 96
    %v2544 = vpop.permute.xlu0 %2543
    %2545 = vrot.lane.b32.xlu0 %v2542, 96
    %v2546 = vpop.permute.xlu0 %2545
    %vm2549 = vcmask 1048320
    %2550 = vst.msk [vmem:[#allocation10] sm:$0xff] %vm2549, %v2544
    %2551 = vst.msk [vmem:[#allocation10 + $0x10] sm:$0xff] %vm2549, %v2546
    %v2552 = vrot.slane %v2324, 4
    %v2553 = vrot.slane %v2327, 3
    %v2554 = vsel %vm2403, %v2553, %v2552
    %v2555 = vrot.slane %v2332, 2
    %v2556 = vsel %vm2406, %v2555, %v2554
    %v2557 = vrot.slane %v2335, 1
    %v2558 = vsel %vm2409, %v2557, %v2556
    %v2559 = vsel %vm2412, %v2340, %v2558
    %v2560 = vrot.slane %v2343, 7
    %v2561 = vsel %vm2415, %v2560, %v2559
    %v2562 = vrot.slane %v2348, 6
    %v2563 = vsel %vm2418, %v2562, %v2561
    %v2564 = vrot.slane %v2351, 5
    %v2565 = vsel %vm2421, %v2564, %v2563
    %v2566 = vrot.slane %v2356, 4
    %v2567 = vrot.slane %v2359, 3
    %v2568 = vsel %vm2403, %v2567, %v2566
    %v2569 = vrot.slane %v2364, 2
    %v2570 = vsel %vm2406, %v2569, %v2568
    %v2571 = vrot.slane %v2367, 1
    %v2572 = vsel %vm2409, %v2571, %v2570
    %v2573 = vsel %vm2412, %v2372, %v2572
    %v2574 = vrot.slane %v2375, 7
    %v2575 = vsel %vm2415, %v2574, %v2573
    %v2576 = vrot.slane %v2380, 6
    %v2577 = vsel %vm2418, %v2576, %v2575
    %v2578 = vrot.slane %v2383, 5
    %v2579 = vsel %vm2421, %v2578, %v2577
    %2582 = vst.msk [vmem:[#allocation10 + $0x8] sm:$0xff] %vm149, %v2565
    %2583 = vst.msk [vmem:[#allocation10 + $0x18] sm:$0xff] %vm149, %v2579
    %v2584 = vrot.slane %v2324, 5
    %v2585 = vrot.slane %v2327, 4
    %v2586 = vsel %vm2403, %v2585, %v2584
    %v2587 = vrot.slane %v2332, 3
    %v2588 = vsel %vm2406, %v2587, %v2586
    %v2589 = vrot.slane %v2335, 2
    %v2590 = vsel %vm2409, %v2589, %v2588
    %v2591 = vrot.slane %v2340, 1
    %v2592 = vsel %vm2412, %v2591, %v2590
    %v2593 = vsel %vm2415, %v2343, %v2592
    %v2594 = vrot.slane %v2348, 7
    %v2595 = vsel %vm2418, %v2594, %v2593
    %v2596 = vrot.slane %v2351, 6
    %v2597 = vsel %vm2421, %v2596, %v2595
    %v2598 = vrot.slane %v2356, 5
    %v2599 = vrot.slane %v2359, 4
    %v2600 = vsel %vm2403, %v2599, %v2598
    %v2601 = vrot.slane %v2364, 3
    %v2602 = vsel %vm2406, %v2601, %v2600
    %v2603 = vrot.slane %v2367, 2
    %v2604 = vsel %vm2409, %v2603, %v2602
    %v2605 = vrot.slane %v2372, 1
    %v2606 = vsel %vm2412, %v2605, %v2604
    %v2607 = vsel %vm2415, %v2375, %v2606
    %v2608 = vrot.slane %v2380, 7
    %v2609 = vsel %vm2418, %v2608, %v2607
    %v2610 = vrot.slane %v2383, 6
    %v2611 = vsel %vm2421, %v2610, %v2609
    %2612 = vrot.lane.b32.xlu0 %v2597, 32
    %v2613 = vpop.permute.xlu0 %2612
    %2614 = vrot.lane.b32.xlu0 %v2611, 32
    %v2615 = vpop.permute.xlu0 %2614
    %2618 = vst.msk [vmem:[#allocation10 + $0x8] sm:$0xff] %vm2475, %v2613
    %2619 = vst.msk [vmem:[#allocation10 + $0x18] sm:$0xff] %vm2475, %v2615
    %v2620 = vrot.slane %v2324, 6
    %v2621 = vrot.slane %v2327, 5
    %v2622 = vsel %vm2403, %v2621, %v2620
    %v2623 = vrot.slane %v2332, 4
    %v2624 = vsel %vm2406, %v2623, %v2622
    %v2625 = vrot.slane %v2335, 3
    %v2626 = vsel %vm2409, %v2625, %v2624
    %v2627 = vrot.slane %v2340, 2
    %v2628 = vsel %vm2412, %v2627, %v2626
    %v2629 = vrot.slane %v2343, 1
    %v2630 = vsel %vm2415, %v2629, %v2628
    %v2631 = vsel %vm2418, %v2348, %v2630
    %v2632 = vrot.slane %v2351, 7
    %v2633 = vsel %vm2421, %v2632, %v2631
    %v2634 = vrot.slane %v2356, 6
    %v2635 = vrot.slane %v2359, 5
    %v2636 = vsel %vm2403, %v2635, %v2634
    %v2637 = vrot.slane %v2364, 4
    %v2638 = vsel %vm2406, %v2637, %v2636
    %v2639 = vrot.slane %v2367, 3
    %v2640 = vsel %vm2409, %v2639, %v2638
    %v2641 = vrot.slane %v2372, 2
    %v2642 = vsel %vm2412, %v2641, %v2640
    %v2643 = vrot.slane %v2375, 1
    %v2644 = vsel %vm2415, %v2643, %v2642
    %v2645 = vsel %vm2418, %v2380, %v2644
    %v2646 = vrot.slane %v2383, 7
    %v2647 = vsel %vm2421, %v2646, %v2645
    %2648 = vrot.lane.b32.xlu0 %v2633, 64
    %v2649 = vpop.permute.xlu0 %2648
    %2650 = vrot.lane.b32.xlu0 %v2647, 64
    %v2651 = vpop.permute.xlu0 %2650
    %2654 = vst.msk [vmem:[#allocation10 + $0x8] sm:$0xff] %vm2512, %v2649
    %2655 = vst.msk [vmem:[#allocation10 + $0x18] sm:$0xff] %vm2512, %v2651
    %v2656 = vrot.slane %v2324, 7
    %v2657 = vrot.slane %v2327, 6
    %v2658 = vsel %vm2403, %v2657, %v2656
    %v2659 = vrot.slane %v2332, 5
    %v2660 = vsel %vm2406, %v2659, %v2658
    %v2661 = vrot.slane %v2335, 4
    %v2662 = vsel %vm2409, %v2661, %v2660
    %v2663 = vrot.slane %v2340, 3
    %v2664 = vsel %vm2412, %v2663, %v2662
    %v2665 = vrot.slane %v2343, 2
    %v2666 = vsel %vm2415, %v2665, %v2664
    %v2667 = vrot.slane %v2348, 1
    %v2668 = vsel %vm2418, %v2667, %v2666
    %v2669 = vsel %vm2421, %v2351, %v2668
    %v2670 = vrot.slane %v2356, 7
    %v2671 = vrot.slane %v2359, 6
    %v2672 = vsel %vm2403, %v2671, %v2670
    %v2673 = vrot.slane %v2364, 5
    %v2674 = vsel %vm2406, %v2673, %v2672
    %v2675 = vrot.slane %v2367, 4
    %v2676 = vsel %vm2409, %v2675, %v2674
    %v2677 = vrot.slane %v2372, 3
    %v2678 = vsel %vm2412, %v2677, %v2676
    %v2679 = vrot.slane %v2375, 2
    %v2680 = vsel %vm2415, %v2679, %v2678
    %v2681 = vrot.slane %v2380, 1
    %v2682 = vsel %vm2418, %v2681, %v2680
    %v2683 = vsel %vm2421, %v2383, %v2682
    %2684 = vrot.lane.b32.xlu0 %v2669, 96
    %v2685 = vpop.permute.xlu0 %2684
    %2686 = vrot.lane.b32.xlu0 %v2683, 96
    %v2687 = vpop.permute.xlu0 %2686
    %2690 = vst.msk [vmem:[#allocation10 + $0x8] sm:$0xff] %vm2549, %v2685
    %2691 = vst.msk [vmem:[#allocation10 + $0x18] sm:$0xff] %vm2549, %v2687
    // Predicated region
    $region38: #{tpu_custom_call.1} parent=1 // pred_check
      _
    $region39: #{tpu_custom_call.1} parent=1 // pred_check_branch
      %2693 = sbr.rel (0) target = $region41
    $region40: #{tpu_custom_call.1} parent=1 // pred_region
      %s2695 = ssub.s32 512, 512
      %2696 = vsyncadd [#allocation4], %s2695
      %s2697 = sshll.u32 [#allocation10], 4
      %s2698 = int_to_ptr.vmem [resolvable:$true] %s2697
      %2703 = dma.vmem_to_hbm [thread:$0]  %s2698, 512, %s5, [#allocation4], 256, 256, 16
    $region41: #{tpu_custom_call.1} parent=1 // pred_fallthru
      _
    // Predicated region
    $region42: #{tpu_custom_call.1} parent=1 // pred_check
      _
    $region43: #{tpu_custom_call.1} parent=1 // pred_check_branch
      %2705 = sbr.rel (0) target = $region45
    $region44: #{tpu_custom_call.1} parent=1 // pred_region
      %2706 = dma.done [#allocation4], 512
    $region45: #{tpu_custom_call.1} parent=1 // pred_fallthru
      _
    %2707 = vsyncpa [#allocation3], 1
    %2708 = vsyncpa [#allocation6], 1
    %2709 = vsyncpa [#allocation9], 1
    %2710 = vsyncpa [#allocation4], 1

</llo_original>
